<compile_context>
chip_gen: v6e
topology: v6e:2x2x1
jax: 0.10.0
libtpu: 0.0.40
codegen_flags: <defaults>
</compile_context>

<pallas_src>
import functools

import jax
import jax.numpy as jnp
from jax.experimental import pallas as pl
from jax.experimental.pallas import tpu as pltpu

EPS = 1e-5  # PyTorch LayerNorm default eps


def _layernorm(z, g, b):
    mu = jnp.mean(z, axis=-1, keepdims=True)
    var = jnp.mean((z - mu) ** 2, axis=-1, keepdims=True)
    return (z - mu) * jax.lax.rsqrt(var + EPS) * g + b


def attention_kernel(x_ref, idx_ref, wqkv_ref, wm_ref, w1_ref, w2_ref,
                     s_ref, st_ref, g1_ref, b1_ref, g2_ref, b2_ref,
                     o_ref, q_s, kv_s, *, num_heads, tile_l):
    t = pl.program_id(1)
    L = x_ref.shape[1]
    C = x_ref.shape[2]
    n = idx_ref.shape[2]
    tL = tile_l
    H = num_heads
    D = C // H
    f32 = jnp.float32
    bf16 = jnp.bfloat16
    scale = 1.0 / (D ** 0.5)

    # ---- once per batch row: LayerNorm1 + fused q|k|v projection, cached ----
    @pl.when(t == 0)
    def _():
        x_full = x_ref[0]                                   # (L, C) f32
        xn = _layernorm(x_full, g1_ref[...], b1_ref[...])
        qkv = jnp.dot(xn.astype(bf16), wqkv_ref[...],
                      preferred_element_type=f32)           # (L, 3C)
        q_s[...] = qkv[:, :C]                               # f32 scores path
        kv_s[...] = qkv[:, C:].astype(bf16)                 # bf16 [k | v] cache

    row = pl.multiple_of(t * tL, tL)
    q_t = q_s[pl.ds(row, tL), :]                            # (tL, C) f32
    kv = kv_s[...]                                          # (L, 2C) bf16
    sel = s_ref[...]                                        # (C, H) bf16
    sel_t = st_ref[...]                                     # (H, C) bf16
    idx = idx_ref[0]                                        # (tL, n) int32
    lane_iota = jax.lax.broadcasted_iota(jnp.int32, (tL, L), 1)

    # ---- per-neighbour gather + per-head logits (all 2-D, unrolled over n) --
    logits = []
    v_cols = []
    for j in range(n):
        onehot = (lane_iota == idx[:, j:j + 1]).astype(bf16)        # (tL, L)
        kv_j = jnp.dot(onehot, kv, preferred_element_type=f32)      # (tL, 2C)
        k_j = kv_j[:, :C]
        v_cols.append(kv_j[:, C:])
        qk_j = jnp.dot((k_j * q_t).astype(bf16), sel,
                       preferred_element_type=f32)                  # (tL, H)
        logits.append(qk_j * scale)

    # ---- softmax over the n neighbours (per row, per head) ----
    m = logits[0]
    for j in range(1, n):
        m = jnp.maximum(m, logits[j])
    es = [jnp.exp(l - m) for l in logits]
    denom = es[0]
    for j in range(1, n):
        denom = denom + es[j]
    inv = pl.reciprocal(denom, approx=True)                         # (tL, H)

    qv = jnp.zeros((tL, C), dtype=f32)
    for j in range(n):
        w_j = es[j] * inv                                           # (tL, H)
        attn_c = jnp.dot(w_j.astype(bf16), sel_t,
                         preferred_element_type=f32)                # (tL, C)
        qv = qv + attn_c * v_cols[j]

    # ---- merge, residual, MLP, LayerNorm2, residual ----
    qv = jnp.dot(qv.astype(bf16), wm_ref[...], preferred_element_type=f32)
    x_t = x_ref[0, pl.ds(row, tL), :]
    message = x_t + qv
    h1 = jnp.maximum(
        jnp.dot(message.astype(bf16), w1_ref[...], preferred_element_type=f32),
        0.0)
    mlp_out = jnp.dot(h1.astype(bf16), w2_ref[...], preferred_element_type=f32)
    out = x_t + _layernorm(mlp_out, g2_ref[...], b2_ref[...])
    o_ref[0] = out.astype(o_ref.dtype)


def attention_forward(x0, query, params, num_heads=8, tile_l=None):
    B, L, C = x0.shape
    n = query.shape[2]
    H = num_heads
    assert C % H == 0
    if tile_l is None:
        tile_l = min(L, 128)
    assert L % tile_l == 0 and tile_l % 8 == 0
    nt = L // tile_l

    wq, wk, wv, wm, w1, w2, g1, b1, g2, b2 = params

    # PyTorch Linear is x @ W.T: pre-transpose, fuse q|k|v, cast MXU weights to bf16.
    wqkv = jnp.concatenate([wq.T, wk.T, wv.T], axis=1).astype(jnp.bfloat16)  # (C, 3C)
    wmt = wm.T.astype(jnp.bfloat16)
    w1t = w1.T.astype(jnp.bfloat16)
    w2t = w2.T.astype(jnp.bfloat16)
    g1r, b1r, g2r, b2r = (p.reshape(1, C).astype(jnp.float32)
                          for p in (g1, b1, g2, b2))

    # Hoisted channel<->head selectors: head h owns channels [h*D, (h+1)*D).
    D = C // H
    sel = (jnp.arange(C)[:, None] // D
           == jnp.arange(H)[None, :]).astype(jnp.bfloat16)   # (C, H)
    sel_t = sel.T                                             # (H, C)

    query = query.astype(jnp.int32)

    def full(shape):
        return pl.BlockSpec(shape, lambda b, t: (0, 0))

    kernel = functools.partial(attention_kernel, num_heads=H, tile_l=tile_l)
    return pl.pallas_call(
        kernel,
        out_shape=jax.ShapeDtypeStruct((B, L, C), x0.dtype),
        grid_spec=pltpu.PrefetchScalarGridSpec(
            num_scalar_prefetch=0,
            grid=(B, nt),
            in_specs=[
                pl.BlockSpec((1, L, C), lambda b, t: (b, 0, 0)),        # x0 (full row, DMA'd once/b)
                pl.BlockSpec((1, tile_l, n), lambda b, t: (b, t, 0)),   # neighbour ids (tile)
                full((C, 3 * C)),                                       # Wqkv
                full((C, C)), full((C, C)), full((C, C)),               # Wm, W1, W2
                full((C, H)), full((H, C)),                             # selectors S, S^T
                full((1, C)), full((1, C)), full((1, C)), full((1, C)), # g1 b1 g2 b2
            ],
            out_specs=pl.BlockSpec((1, tile_l, C), lambda b, t: (b, t, 0)),
            scratch_shapes=[
                pltpu.VMEM((L, C), jnp.float32),       # cached q
                pltpu.VMEM((L, 2 * C), jnp.bfloat16),  # cached [k | v]
            ],
        ),
        compiler_params=pltpu.CompilerParams(
            dimension_semantics=("parallel", "arbitrary"),
            vmem_limit_bytes=32 * 1024 * 1024,
        ),
    )(x0, query, wqkv, wmt, w1t, w2t, sel, sel_t, g1r, b1r, g2r, b2r)


def attention_reference(x0, query, params, num_heads=8):
    """Pure-JAX mirror of the PyTorch forward (for verification)."""
    wq, wk, wv, wm, w1, w2, g1, b1, g2, b2 = params
    B, L, C = x0.shape
    n = query.shape[2]
    H = num_heads
    D = C // H

    xn = _layernorm(x0, g1, b1)
    q = xn @ wq.T
    k = xn @ wk.T
    v = xn @ wv.T

    gather = jax.vmap(lambda arr, idx: arr[idx.reshape(-1)])
    k_nb = gather(k, query).reshape(B, L, n, C)
    v_nb = gather(v, query).reshape(B, L, n, C)

    qh = q.reshape(B, L, 1, H, D)
    kh = k_nb.reshape(B, L, n, H, D)
    vh = v_nb.reshape(B, L, n, H, D)
    qk = (qh * kh).sum(-1)                                     # (B, L, n, H)
    attn = jax.nn.softmax(qk * (1.0 / (D ** 0.5)), axis=2)
    qv = (attn[..., None] * vh).sum(axis=2).reshape(B, L, C)
    qv = qv @ wm.T
    message = x0 + qv
    mlp_out = jax.nn.relu(message @ w1.T) @ w2.T
    return x0 + _layernorm(mlp_out, g2, b2)


if __name__ == "__main__":
    # batch, seq/points, channels, neighbours, heads, L-tile
    B, L, C, n, H, TL = 2, 64, 32, 4, 8, 16

    key = jax.random.PRNGKey(0)
    keys = jax.random.split(key, 12)
    x0 = jax.random.normal(keys[0], (B, L, C), dtype=jnp.float32)
    query = jax.random.randint(keys[1], (B, L, n), 0, L, dtype=jnp.int32)

    scale = 1.0 / (C ** 0.5)
    wq = jax.random.normal(keys[2], (C, C), dtype=jnp.float32) * scale
    wk = jax.random.normal(keys[3], (C, C), dtype=jnp.float32) * scale
    wv = jax.random.normal(keys[4], (C, C), dtype=jnp.float32) * scale
    wm = jax.random.normal(keys[5], (C, C), dtype=jnp.float32) * scale
    w1 = jax.random.normal(keys[6], (C, C), dtype=jnp.float32) * scale
    w2 = jax.random.normal(keys[7], (C, C), dtype=jnp.float32) * scale
    g1 = 1.0 + 0.1 * jax.random.normal(keys[8], (C,), dtype=jnp.float32)
    b1 = 0.1 * jax.random.normal(keys[9], (C,), dtype=jnp.float32)
    g2 = 1.0 + 0.1 * jax.random.normal(keys[10], (C,), dtype=jnp.float32)
    b2 = 0.1 * jax.random.normal(keys[11], (C,), dtype=jnp.float32)
    params = (wq, wk, wv, wm, w1, w2, g1, b1, g2, b2)

    out = attention_forward(x0, query, params, num_heads=H, tile_l=TL)
    out = jax.block_until_ready(out)

    ref = attention_reference(x0, query, params, num_heads=H)
    max_err = float(jnp.max(jnp.abs(out - ref)))
    # Kernel runs MXU operands in bf16 (f32 accumulate) vs an f32-path reference,
    # so validate with a bf16-appropriate tolerance.
    if not jnp.allclose(out, ref, atol=5e-2, rtol=5e-2):
        raise AssertionError(f"kernel mismatch vs reference, max abs err {max_err}")

    print("KERNEL_OK")
</pallas_src>

<mosaic_0001>
module attributes {stable_mosaic.version = 11 : i64} {
  func.func @attention_kernel(%arg0: i32, %arg1: i32, %arg2: memref<1x64x32xf32, #tpu.memory_space<vmem>>, %arg3: memref<1x16x4xi32, #tpu.memory_space<vmem>>, %arg4: memref<32x96xbf16, #tpu.memory_space<vmem>>, %arg5: memref<32x32xbf16, #tpu.memory_space<vmem>>, %arg6: memref<32x32xbf16, #tpu.memory_space<vmem>>, %arg7: memref<32x32xbf16, #tpu.memory_space<vmem>>, %arg8: memref<32x8xbf16, #tpu.memory_space<vmem>>, %arg9: memref<8x32xbf16, #tpu.memory_space<vmem>>, %arg10: memref<1x32xf32, #tpu.memory_space<vmem>>, %arg11: memref<1x32xf32, #tpu.memory_space<vmem>>, %arg12: memref<1x32xf32, #tpu.memory_space<vmem>>, %arg13: memref<1x32xf32, #tpu.memory_space<vmem>>, %arg14: memref<1x16x32xf32, #tpu.memory_space<vmem>>, %arg15: memref<64x32xf32, #tpu.memory_space<vmem>>, %arg16: memref<64x64xbf16, #tpu.memory_space<vmem>>) attributes {dimension_semantics = [#tpu.dimension_semantics<parallel>, #tpu.dimension_semantics<arbitrary>], iteration_bounds = array<i64: 2, 4>, scalar_prefetch = 0 : i64, scratch_operands = 2 : i64, tpu.core_type = #tpu.core_type<tc>, window_params = [{transform_indices = @transform_0, window_bounds = array<i64: 1, 64, 32>}, {transform_indices = @transform_1, window_bounds = array<i64: 1, 16, 4>}, {pipeline_mode = #tpu.pipeline_mode<synchronous>, transform_indices = @transform_2, window_bounds = array<i64: 32, 96>}, {pipeline_mode = #tpu.pipeline_mode<synchronous>, transform_indices = @transform_3, window_bounds = array<i64: 32, 32>}, {pipeline_mode = #tpu.pipeline_mode<synchronous>, transform_indices = @transform_4, window_bounds = array<i64: 32, 32>}, {pipeline_mode = #tpu.pipeline_mode<synchronous>, transform_indices = @transform_5, window_bounds = array<i64: 32, 32>}, {pipeline_mode = #tpu.pipeline_mode<synchronous>, transform_indices = @transform_6, window_bounds = array<i64: 32, 8>}, {pipeline_mode = #tpu.pipeline_mode<synchronous>, transform_indices = @transform_7, window_bounds = array<i64: 8, 32>}, {pipeline_mode = #tpu.pipeline_mode<synchronous>, transform_indices = @transform_8, window_bounds = array<i64: 1, 32>}, {pipeline_mode = #tpu.pipeline_mode<synchronous>, transform_indices = @transform_9, window_bounds = array<i64: 1, 32>}, {pipeline_mode = #tpu.pipeline_mode<synchronous>, transform_indices = @transform_10, window_bounds = array<i64: 1, 32>}, {pipeline_mode = #tpu.pipeline_mode<synchronous>, transform_indices = @transform_11, window_bounds = array<i64: 1, 32>}, {transform_indices = @transform_12, window_bounds = array<i64: 1, 16, 32>}]} {
    %c0_i32 = arith.constant 0 : i32
    %0 = arith.cmpi eq, %arg1, %c0_i32 : i32
    %1 = arith.extui %0 : i1 to i32
    %c0_i32_0 = arith.constant 0 : i32
    %2 = arith.cmpi ne, %1, %c0_i32_0 : i32
    scf.if %2 {
      %c0_50 = arith.constant 0 : index
      %c0_51 = arith.constant 0 : index
      %c0_52 = arith.constant 0 : index
      %148 = vector.load %arg2[%c0_50, %c0_51, %c0_52] : memref<1x64x32xf32, #tpu.memory_space<vmem>>, vector<1x64x32xf32>
      %149 = vector.shape_cast %148 : vector<1x64x32xf32> to vector<64x32xf32>
      %c0_53 = arith.constant 0 : index
      %c0_54 = arith.constant 0 : index
      %150 = vector.load %arg10[%c0_53, %c0_54] : memref<1x32xf32, #tpu.memory_space<vmem>>, vector<1x32xf32>
      %c0_55 = arith.constant 0 : index
      %c0_56 = arith.constant 0 : index
      %151 = vector.load %arg11[%c0_55, %c0_56] : memref<1x32xf32, #tpu.memory_space<vmem>>, vector<1x32xf32>
      %cst_57 = arith.constant dense<0.000000e+00> : vector<64xf32>
      %152 = vector.multi_reduction <add>, %149, %cst_57 [1] : vector<64x32xf32> to vector<64xf32>
      %153 = vector.shape_cast %152 : vector<64xf32> to vector<64x1xf32>
      %cst_58 = arith.constant 3.200000e+01 : f32
      %154 = vector.broadcast %cst_58 : f32 to vector<64x1xf32>
      %155 = arith.divf %153, %154 : vector<64x1xf32>
      %156 = vector.broadcast %155 : vector<64x1xf32> to vector<64x32xf32>
      %157 = arith.subf %149, %156 : vector<64x32xf32>
      %158 = arith.mulf %157, %157 : vector<64x32xf32>
      %cst_59 = arith.constant dense<0.000000e+00> : vector<64xf32>
      %159 = vector.multi_reduction <add>, %158, %cst_59 [1] : vector<64x32xf32> to vector<64xf32>
      %160 = vector.shape_cast %159 : vector<64xf32> to vector<64x1xf32>
      %cst_60 = arith.constant 3.200000e+01 : f32
      %161 = vector.broadcast %cst_60 : f32 to vector<64x1xf32>
      %162 = arith.divf %160, %161 : vector<64x1xf32>
      %163 = vector.broadcast %155 : vector<64x1xf32> to vector<64x32xf32>
      %164 = arith.subf %149, %163 : vector<64x32xf32>
      %cst_61 = arith.constant 9.99999974E-6 : f32
      %165 = vector.broadcast %cst_61 : f32 to vector<64x1xf32>
      %166 = arith.addf %162, %165 : vector<64x1xf32>
      %167 = math.rsqrt %166 : vector<64x1xf32>
      %168 = vector.broadcast %167 : vector<64x1xf32> to vector<64x32xf32>
      %169 = arith.mulf %164, %168 : vector<64x32xf32>
      %170 = vector.broadcast %150 : vector<1x32xf32> to vector<64x32xf32>
      %171 = arith.mulf %169, %170 : vector<64x32xf32>
      %172 = vector.broadcast %151 : vector<1x32xf32> to vector<64x32xf32>
      %173 = arith.addf %171, %172 : vector<64x32xf32>
      %174 = arith.truncf %173 : vector<64x32xf32> to vector<64x32xbf16>
      %c0_62 = arith.constant 0 : index
      %c0_63 = arith.constant 0 : index
      %175 = vector.load %arg4[%c0_62, %c0_63] : memref<32x96xbf16, #tpu.memory_space<vmem>>, vector<32x96xbf16>
      %cst_64 = arith.constant dense<0.000000e+00> : vector<64x96xf32>
      %176 = tpu.matmul %174, %175, %cst_64 {dimension_numbers = #tpu.dot_dimension_numbers<[1], [0], [0], [1], [0, 0, 1, 1], [], []>} : vector<64x32xbf16>, vector<32x96xbf16>, vector<64x96xf32> -> vector<64x96xf32>
      %177 = vector.extract_strided_slice %176 {offsets = [0, 0], sizes = [64, 32], strides = [1, 1]} : vector<64x96xf32> to vector<64x32xf32>
      %c0_65 = arith.constant 0 : index
      %c0_66 = arith.constant 0 : index
      %178 = vector.load %arg15[%c0_65, %c0_66] : memref<64x32xf32, #tpu.memory_space<vmem>>, vector<64x32xf32>
      tpu.vector_store %arg15[%c0_65, %c0_66], %177 {strides = array<i32>} : memref<64x32xf32, #tpu.memory_space<vmem>>, vector<64x32xf32>,
      %179 = vector.extract_strided_slice %176 {offsets = [0, 32], sizes = [64, 64], strides = [1, 1]} : vector<64x96xf32> to vector<64x64xf32>
      %180 = arith.truncf %179 : vector<64x64xf32> to vector<64x64xbf16>
      %c0_67 = arith.constant 0 : index
      %c0_68 = arith.constant 0 : index
      %181 = vector.load %arg16[%c0_67, %c0_68] : memref<64x64xbf16, #tpu.memory_space<vmem>>, vector<64x64xbf16>
      tpu.vector_store %arg16[%c0_67, %c0_68], %180 {strides = array<i32>} : memref<64x64xbf16, #tpu.memory_space<vmem>>, vector<64x64xbf16>,
    } else {
    }
    %c16_i32 = arith.constant 16 : i32
    %3 = arith.muli %arg1, %c16_i32 : i32
    %4 = tpu.assume_multiple %3, 16 : i32
    %5 = arith.index_cast %4 : i32 to index
    %c0 = arith.constant 0 : index
    %6 = vector.load %arg15[%5, %c0] : memref<64x32xf32, #tpu.memory_space<vmem>>, vector<16x32xf32>
    %c0_1 = arith.constant 0 : index
    %c0_2 = arith.constant 0 : index
    %7 = vector.load %arg16[%c0_1, %c0_2] : memref<64x64xbf16, #tpu.memory_space<vmem>>, vector<64x64xbf16>
    %c0_3 = arith.constant 0 : index
    %c0_4 = arith.constant 0 : index
    %8 = vector.load %arg8[%c0_3, %c0_4] : memref<32x8xbf16, #tpu.memory_space<vmem>>, vector<32x8xbf16>
    %c0_5 = arith.constant 0 : index
    %c0_6 = arith.constant 0 : index
    %9 = vector.load %arg9[%c0_5, %c0_6] : memref<8x32xbf16, #tpu.memory_space<vmem>>, vector<8x32xbf16>
    %c0_7 = arith.constant 0 : index
    %c0_8 = arith.constant 0 : index
    %c0_9 = arith.constant 0 : index
    %10 = vector.load %arg3[%c0_7, %c0_8, %c0_9] : memref<1x16x4xi32, #tpu.memory_space<vmem>>, vector<1x16x4xi32>
    %11 = vector.shape_cast %10 : vector<1x16x4xi32> to vector<16x4xi32>
    %12 = tpu.iota {dimensions = array<i32: 1>} : vector<16x64xi32>
    %13 = vector.extract_strided_slice %11 {offsets = [0, 0], sizes = [16, 1], strides = [1, 1]} : vector<16x4xi32> to vector<16x1xi32>
    %14 = vector.broadcast %13 : vector<16x1xi32> to vector<16x64xi32>
    %15 = arith.cmpi eq, %12, %14 : vector<16x64xi32>
    %16 = arith.extui %15 : vector<16x64xi1> to vector<16x64xi32>
    %17 = arith.sitofp %16 : vector<16x64xi32> to vector<16x64xf32>
    %18 = arith.truncf %17 : vector<16x64xf32> to vector<16x64xbf16>
    %cst = arith.constant dense<0.000000e+00> : vector<16x64xf32>
    %19 = tpu.matmul %18, %7, %cst {dimension_numbers = #tpu.dot_dimension_numbers<[1], [0], [0], [1], [0, 0, 1, 1], [], []>} : vector<16x64xbf16>, vector<64x64xbf16>, vector<16x64xf32> -> vector<16x64xf32>
    %20 = vector.extract_strided_slice %19 {offsets = [0, 0], sizes = [16, 32], strides = [1, 1]} : vector<16x64xf32> to vector<16x32xf32>
    %21 = vector.extract_strided_slice %19 {offsets = [0, 32], sizes = [16, 32], strides = [1, 1]} : vector<16x64xf32> to vector<16x32xf32>
    %22 = arith.mulf %20, %6 : vector<16x32xf32>
    %23 = arith.truncf %22 : vector<16x32xf32> to vector<16x32xbf16>
    %cst_10 = arith.constant dense<0.000000e+00> : vector<16x8xf32>
    %24 = tpu.matmul %23, %8, %cst_10 {dimension_numbers = #tpu.dot_dimension_numbers<[1], [0], [0], [1], [0, 0, 1, 1], [], []>} : vector<16x32xbf16>, vector<32x8xbf16>, vector<16x8xf32> -> vector<16x8xf32>
    %cst_11 = arith.constant 5.000000e-01 : f32
    %25 = vector.broadcast %cst_11 : f32 to vector<16x8xf32>
    %26 = arith.mulf %24, %25 : vector<16x8xf32>
    %27 = vector.extract_strided_slice %11 {offsets = [0, 1], sizes = [16, 1], strides = [1, 1]} : vector<16x4xi32> to vector<16x1xi32>
    %28 = vector.broadcast %27 : vector<16x1xi32> to vector<16x64xi32>
    %29 = arith.cmpi eq, %12, %28 : vector<16x64xi32>
    %30 = arith.extui %29 : vector<16x64xi1> to vector<16x64xi32>
    %31 = arith.sitofp %30 : vector<16x64xi32> to vector<16x64xf32>
    %32 = arith.truncf %31 : vector<16x64xf32> to vector<16x64xbf16>
    %cst_12 = arith.constant dense<0.000000e+00> : vector<16x64xf32>
    %33 = tpu.matmul %32, %7, %cst_12 {dimension_numbers = #tpu.dot_dimension_numbers<[1], [0], [0], [1], [0, 0, 1, 1], [], []>} : vector<16x64xbf16>, vector<64x64xbf16>, vector<16x64xf32> -> vector<16x64xf32>
    %34 = vector.extract_strided_slice %33 {offsets = [0, 0], sizes = [16, 32], strides = [1, 1]} : vector<16x64xf32> to vector<16x32xf32>
    %35 = vector.extract_strided_slice %33 {offsets = [0, 32], sizes = [16, 32], strides = [1, 1]} : vector<16x64xf32> to vector<16x32xf32>
    %36 = arith.mulf %34, %6 : vector<16x32xf32>
    %37 = arith.truncf %36 : vector<16x32xf32> to vector<16x32xbf16>
    %cst_13 = arith.constant dense<0.000000e+00> : vector<16x8xf32>
    %38 = tpu.matmul %37, %8, %cst_13 {dimension_numbers = #tpu.dot_dimension_numbers<[1], [0], [0], [1], [0, 0, 1, 1], [], []>} : vector<16x32xbf16>, vector<32x8xbf16>, vector<16x8xf32> -> vector<16x8xf32>
    %cst_14 = arith.constant 5.000000e-01 : f32
    %39 = vector.broadcast %cst_14 : f32 to vector<16x8xf32>
    %40 = arith.mulf %38, %39 : vector<16x8xf32>
    %41 = vector.extract_strided_slice %11 {offsets = [0, 2], sizes = [16, 1], strides = [1, 1]} : vector<16x4xi32> to vector<16x1xi32>
    %42 = vector.broadcast %41 : vector<16x1xi32> to vector<16x64xi32>
    %43 = arith.cmpi eq, %12, %42 : vector<16x64xi32>
    %44 = arith.extui %43 : vector<16x64xi1> to vector<16x64xi32>
    %45 = arith.sitofp %44 : vector<16x64xi32> to vector<16x64xf32>
    %46 = arith.truncf %45 : vector<16x64xf32> to vector<16x64xbf16>
    %cst_15 = arith.constant dense<0.000000e+00> : vector<16x64xf32>
    %47 = tpu.matmul %46, %7, %cst_15 {dimension_numbers = #tpu.dot_dimension_numbers<[1], [0], [0], [1], [0, 0, 1, 1], [], []>} : vector<16x64xbf16>, vector<64x64xbf16>, vector<16x64xf32> -> vector<16x64xf32>
    %48 = vector.extract_strided_slice %47 {offsets = [0, 0], sizes = [16, 32], strides = [1, 1]} : vector<16x64xf32> to vector<16x32xf32>
    %49 = vector.extract_strided_slice %47 {offsets = [0, 32], sizes = [16, 32], strides = [1, 1]} : vector<16x64xf32> to vector<16x32xf32>
    %50 = arith.mulf %48, %6 : vector<16x32xf32>
    %51 = arith.truncf %50 : vector<16x32xf32> to vector<16x32xbf16>
    %cst_16 = arith.constant dense<0.000000e+00> : vector<16x8xf32>
    %52 = tpu.matmul %51, %8, %cst_16 {dimension_numbers = #tpu.dot_dimension_numbers<[1], [0], [0], [1], [0, 0, 1, 1], [], []>} : vector<16x32xbf16>, vector<32x8xbf16>, vector<16x8xf32> -> vector<16x8xf32>
    %cst_17 = arith.constant 5.000000e-01 : f32
    %53 = vector.broadcast %cst_17 : f32 to vector<16x8xf32>
    %54 = arith.mulf %52, %53 : vector<16x8xf32>
    %55 = vector.extract_strided_slice %11 {offsets = [0, 3], sizes = [16, 1], strides = [1, 1]} : vector<16x4xi32> to vector<16x1xi32>
    %56 = vector.broadcast %55 : vector<16x1xi32> to vector<16x64xi32>
    %57 = arith.cmpi eq, %12, %56 : vector<16x64xi32>
    %58 = arith.extui %57 : vector<16x64xi1> to vector<16x64xi32>
    %59 = arith.sitofp %58 : vector<16x64xi32> to vector<16x64xf32>
    %60 = arith.truncf %59 : vector<16x64xf32> to vector<16x64xbf16>
    %cst_18 = arith.constant dense<0.000000e+00> : vector<16x64xf32>
    %61 = tpu.matmul %60, %7, %cst_18 {dimension_numbers = #tpu.dot_dimension_numbers<[1], [0], [0], [1], [0, 0, 1, 1], [], []>} : vector<16x64xbf16>, vector<64x64xbf16>, vector<16x64xf32> -> vector<16x64xf32>
    %62 = vector.extract_strided_slice %61 {offsets = [0, 0], sizes = [16, 32], strides = [1, 1]} : vector<16x64xf32> to vector<16x32xf32>
    %63 = vector.extract_strided_slice %61 {offsets = [0, 32], sizes = [16, 32], strides = [1, 1]} : vector<16x64xf32> to vector<16x32xf32>
    %64 = arith.mulf %62, %6 : vector<16x32xf32>
    %65 = arith.truncf %64 : vector<16x32xf32> to vector<16x32xbf16>
    %cst_19 = arith.constant dense<0.000000e+00> : vector<16x8xf32>
    %66 = tpu.matmul %65, %8, %cst_19 {dimension_numbers = #tpu.dot_dimension_numbers<[1], [0], [0], [1], [0, 0, 1, 1], [], []>} : vector<16x32xbf16>, vector<32x8xbf16>, vector<16x8xf32> -> vector<16x8xf32>
    %cst_20 = arith.constant 5.000000e-01 : f32
    %67 = vector.broadcast %cst_20 : f32 to vector<16x8xf32>
    %68 = arith.mulf %66, %67 : vector<16x8xf32>
    %69 = arith.maximumf %26, %40 : vector<16x8xf32>
    %70 = arith.maximumf %69, %54 : vector<16x8xf32>
    %71 = arith.maximumf %70, %68 : vector<16x8xf32>
    %72 = arith.subf %26, %71 : vector<16x8xf32>
    %73 = math.exp %72 : vector<16x8xf32>
    %74 = arith.subf %40, %71 : vector<16x8xf32>
    %75 = math.exp %74 : vector<16x8xf32>
    %76 = arith.subf %54, %71 : vector<16x8xf32>
    %77 = math.exp %76 : vector<16x8xf32>
    %78 = arith.subf %68, %71 : vector<16x8xf32>
    %79 = math.exp %78 : vector<16x8xf32>
    %80 = arith.addf %73, %75 : vector<16x8xf32>
    %81 = arith.addf %80, %77 : vector<16x8xf32>
    %82 = arith.addf %81, %79 : vector<16x8xf32>
    %83 = tpu.reciprocal %82 {approx = true} : vector<16x8xf32> -> vector<16x8xf32>
    %cst_21 = arith.constant 0.000000e+00 : f32
    %84 = vector.broadcast %cst_21 : f32 to vector<16x32xf32>
    %85 = arith.mulf %73, %83 : vector<16x8xf32>
    %86 = arith.truncf %85 : vector<16x8xf32> to vector<16x8xbf16>
    %cst_22 = arith.constant dense<0.000000e+00> : vector<16x32xf32>
    %87 = tpu.matmul %86, %9, %cst_22 {dimension_numbers = #tpu.dot_dimension_numbers<[1], [0], [0], [1], [0, 0, 1, 1], [], []>} : vector<16x8xbf16>, vector<8x32xbf16>, vector<16x32xf32> -> vector<16x32xf32>
    %88 = arith.mulf %87, %21 : vector<16x32xf32>
    %89 = arith.addf %84, %88 : vector<16x32xf32>
    %90 = arith.mulf %75, %83 : vector<16x8xf32>
    %91 = arith.truncf %90 : vector<16x8xf32> to vector<16x8xbf16>
    %cst_23 = arith.constant dense<0.000000e+00> : vector<16x32xf32>
    %92 = tpu.matmul %91, %9, %cst_23 {dimension_numbers = #tpu.dot_dimension_numbers<[1], [0], [0], [1], [0, 0, 1, 1], [], []>} : vector<16x8xbf16>, vector<8x32xbf16>, vector<16x32xf32> -> vector<16x32xf32>
    %93 = arith.mulf %92, %35 : vector<16x32xf32>
    %94 = arith.addf %89, %93 : vector<16x32xf32>
    %95 = arith.mulf %77, %83 : vector<16x8xf32>
    %96 = arith.truncf %95 : vector<16x8xf32> to vector<16x8xbf16>
    %cst_24 = arith.constant dense<0.000000e+00> : vector<16x32xf32>
    %97 = tpu.matmul %96, %9, %cst_24 {dimension_numbers = #tpu.dot_dimension_numbers<[1], [0], [0], [1], [0, 0, 1, 1], [], []>} : vector<16x8xbf16>, vector<8x32xbf16>, vector<16x32xf32> -> vector<16x32xf32>
    %98 = arith.mulf %97, %49 : vector<16x32xf32>
    %99 = arith.addf %94, %98 : vector<16x32xf32>
    %100 = arith.mulf %79, %83 : vector<16x8xf32>
    %101 = arith.truncf %100 : vector<16x8xf32> to vector<16x8xbf16>
    %cst_25 = arith.constant dense<0.000000e+00> : vector<16x32xf32>
    %102 = tpu.matmul %101, %9, %cst_25 {dimension_numbers = #tpu.dot_dimension_numbers<[1], [0], [0], [1], [0, 0, 1, 1], [], []>} : vector<16x8xbf16>, vector<8x32xbf16>, vector<16x32xf32> -> vector<16x32xf32>
    %103 = arith.mulf %102, %63 : vector<16x32xf32>
    %104 = arith.addf %99, %103 : vector<16x32xf32>
    %105 = arith.truncf %104 : vector<16x32xf32> to vector<16x32xbf16>
    %c0_26 = arith.constant 0 : index
    %c0_27 = arith.constant 0 : index
    %106 = vector.load %arg5[%c0_26, %c0_27] : memref<32x32xbf16, #tpu.memory_space<vmem>>, vector<32x32xbf16>
    %cst_28 = arith.constant dense<0.000000e+00> : vector<16x32xf32>
    %107 = tpu.matmul %105, %106, %cst_28 {dimension_numbers = #tpu.dot_dimension_numbers<[1], [0], [0], [1], [0, 0, 1, 1], [], []>} : vector<16x32xbf16>, vector<32x32xbf16>, vector<16x32xf32> -> vector<16x32xf32>
    %c0_29 = arith.constant 0 : index
    %108 = arith.index_cast %4 : i32 to index
    %c0_30 = arith.constant 0 : index
    %109 = vector.load %arg2[%c0_29, %108, %c0_30] : memref<1x64x32xf32, #tpu.memory_space<vmem>>, vector<1x16x32xf32>
    %110 = vector.shape_cast %109 : vector<1x16x32xf32> to vector<16x32xf32>
    %111 = arith.addf %110, %107 : vector<16x32xf32>
    %112 = arith.truncf %111 : vector<16x32xf32> to vector<16x32xbf16>
    %c0_31 = arith.constant 0 : index
    %c0_32 = arith.constant 0 : index
    %113 = vector.load %arg6[%c0_31, %c0_32] : memref<32x32xbf16, #tpu.memory_space<vmem>>, vector<32x32xbf16>
    %cst_33 = arith.constant dense<0.000000e+00> : vector<16x32xf32>
    %114 = tpu.matmul %112, %113, %cst_33 {dimension_numbers = #tpu.dot_dimension_numbers<[1], [0], [0], [1], [0, 0, 1, 1], [], []>} : vector<16x32xbf16>, vector<32x32xbf16>, vector<16x32xf32> -> vector<16x32xf32>
    %cst_34 = arith.constant 0.000000e+00 : f32
    %115 = vector.broadcast %cst_34 : f32 to vector<16x32xf32>
    %116 = arith.maximumf %114, %115 : vector<16x32xf32>
    %117 = arith.truncf %116 : vector<16x32xf32> to vector<16x32xbf16>
    %c0_35 = arith.constant 0 : index
    %c0_36 = arith.constant 0 : index
    %118 = vector.load %arg7[%c0_35, %c0_36] : memref<32x32xbf16, #tpu.memory_space<vmem>>, vector<32x32xbf16>
    %cst_37 = arith.constant dense<0.000000e+00> : vector<16x32xf32>
    %119 = tpu.matmul %117, %118, %cst_37 {dimension_numbers = #tpu.dot_dimension_numbers<[1], [0], [0], [1], [0, 0, 1, 1], [], []>} : vector<16x32xbf16>, vector<32x32xbf16>, vector<16x32xf32> -> vector<16x32xf32>
    %c0_38 = arith.constant 0 : index
    %c0_39 = arith.constant 0 : index
    %120 = vector.load %arg12[%c0_38, %c0_39] : memref<1x32xf32, #tpu.memory_space<vmem>>, vector<1x32xf32>
    %c0_40 = arith.constant 0 : index
    %c0_41 = arith.constant 0 : index
    %121 = vector.load %arg13[%c0_40, %c0_41] : memref<1x32xf32, #tpu.memory_space<vmem>>, vector<1x32xf32>
    %cst_42 = arith.constant dense<0.000000e+00> : vector<16xf32>
    %122 = vector.multi_reduction <add>, %119, %cst_42 [1] : vector<16x32xf32> to vector<16xf32>
    %123 = vector.shape_cast %122 : vector<16xf32> to vector<16x1xf32>
    %cst_43 = arith.constant 3.200000e+01 : f32
    %124 = vector.broadcast %cst_43 : f32 to vector<16x1xf32>
    %125 = arith.divf %123, %124 : vector<16x1xf32>
    %126 = vector.broadcast %125 : vector<16x1xf32> to vector<16x32xf32>
    %127 = arith.subf %119, %126 : vector<16x32xf32>
    %128 = arith.mulf %127, %127 : vector<16x32xf32>
    %cst_44 = arith.constant dense<0.000000e+00> : vector<16xf32>
    %129 = vector.multi_reduction <add>, %128, %cst_44 [1] : vector<16x32xf32> to vector<16xf32>
    %130 = vector.shape_cast %129 : vector<16xf32> to vector<16x1xf32>
    %cst_45 = arith.constant 3.200000e+01 : f32
    %131 = vector.broadcast %cst_45 : f32 to vector<16x1xf32>
    %132 = arith.divf %130, %131 : vector<16x1xf32>
    %133 = vector.broadcast %125 : vector<16x1xf32> to vector<16x32xf32>
    %134 = arith.subf %119, %133 : vector<16x32xf32>
    %cst_46 = arith.constant 9.99999974E-6 : f32
    %135 = vector.broadcast %cst_46 : f32 to vector<16x1xf32>
    %136 = arith.addf %132, %135 : vector<16x1xf32>
    %137 = math.rsqrt %136 : vector<16x1xf32>
    %138 = vector.broadcast %137 : vector<16x1xf32> to vector<16x32xf32>
    %139 = arith.mulf %134, %138 : vector<16x32xf32>
    %140 = vector.broadcast %120 : vector<1x32xf32> to vector<16x32xf32>
    %141 = arith.mulf %139, %140 : vector<16x32xf32>
    %142 = vector.broadcast %121 : vector<1x32xf32> to vector<16x32xf32>
    %143 = arith.addf %141, %142 : vector<16x32xf32>
    %144 = arith.addf %110, %143 : vector<16x32xf32>
    %c0_47 = arith.constant 0 : index
    %c0_48 = arith.constant 0 : index
    %c0_49 = arith.constant 0 : index
    %145 = vector.load %arg14[%c0_47, %c0_48, %c0_49] : memref<1x16x32xf32, #tpu.memory_space<vmem>>, vector<1x16x32xf32>
    %146 = vector.shape_cast %145 : vector<1x16x32xf32> to vector<16x32xf32>
    %147 = vector.shape_cast %144 : vector<16x32xf32> to vector<1x16x32xf32>
    tpu.vector_store %arg14[%c0_47, %c0_48, %c0_49], %147 {strides = array<i32>} : memref<1x16x32xf32, #tpu.memory_space<vmem>>, vector<1x16x32xf32>,
    return
  }
  func.func @transform_0(%arg0: i32, %arg1: i32) -> (i32, i32, i32) {
    %c0_i32 = arith.constant 0 : i32
    %c0_i32_0 = arith.constant 0 : i32
    %c0_i32_1 = arith.constant 0 : i32
    return %arg0, %c0_i32, %c0_i32_0 : i32, i32, i32
  }
  func.func @transform_1(%arg0: i32, %arg1: i32) -> (i32, i32, i32) {
    %c0_i32 = arith.constant 0 : i32
    %c0_i32_0 = arith.constant 0 : i32
    return %arg0, %arg1, %c0_i32 : i32, i32, i32
  }
  func.func @transform_2(%arg0: i32, %arg1: i32) -> (i32, i32) {
    %c0_i32 = arith.constant 0 : i32
    %c0_i32_0 = arith.constant 0 : i32
    %c0_i32_1 = arith.constant 0 : i32
    return %c0_i32, %c0_i32_0 : i32, i32
  }
  func.func @transform_3(%arg0: i32, %arg1: i32) -> (i32, i32) {
    %c0_i32 = arith.constant 0 : i32
    %c0_i32_0 = arith.constant 0 : i32
    %c0_i32_1 = arith.constant 0 : i32
    return %c0_i32, %c0_i32_0 : i32, i32
  }
  func.func @transform_4(%arg0: i32, %arg1: i32) -> (i32, i32) {
    %c0_i32 = arith.constant 0 : i32
    %c0_i32_0 = arith.constant 0 : i32
    %c0_i32_1 = arith.constant 0 : i32
    return %c0_i32, %c0_i32_0 : i32, i32
  }
  func.func @transform_5(%arg0: i32, %arg1: i32) -> (i32, i32) {
    %c0_i32 = arith.constant 0 : i32
    %c0_i32_0 = arith.constant 0 : i32
    %c0_i32_1 = arith.constant 0 : i32
    return %c0_i32, %c0_i32_0 : i32, i32
  }
  func.func @transform_6(%arg0: i32, %arg1: i32) -> (i32, i32) {
    %c0_i32 = arith.constant 0 : i32
    %c0_i32_0 = arith.constant 0 : i32
    %c0_i32_1 = arith.constant 0 : i32
    return %c0_i32, %c0_i32_0 : i32, i32
  }
  func.func @transform_7(%arg0: i32, %arg1: i32) -> (i32, i32) {
    %c0_i32 = arith.constant 0 : i32
    %c0_i32_0 = arith.constant 0 : i32
    %c0_i32_1 = arith.constant 0 : i32
    return %c0_i32, %c0_i32_0 : i32, i32
  }
  func.func @transform_8(%arg0: i32, %arg1: i32) -> (i32, i32) {
    %c0_i32 = arith.constant 0 : i32
    %c0_i32_0 = arith.constant 0 : i32
    %c0_i32_1 = arith.constant 0 : i32
    return %c0_i32, %c0_i32_0 : i32, i32
  }
  func.func @transform_9(%arg0: i32, %arg1: i32) -> (i32, i32) {
    %c0_i32 = arith.constant 0 : i32
    %c0_i32_0 = arith.constant 0 : i32
    %c0_i32_1 = arith.constant 0 : i32
    return %c0_i32, %c0_i32_0 : i32, i32
  }
  func.func @transform_10(%arg0: i32, %arg1: i32) -> (i32, i32) {
    %c0_i32 = arith.constant 0 : i32
    %c0_i32_0 = arith.constant 0 : i32
    %c0_i32_1 = arith.constant 0 : i32
    return %c0_i32, %c0_i32_0 : i32, i32
  }
  func.func @transform_11(%arg0: i32, %arg1: i32) -> (i32, i32) {
    %c0_i32 = arith.constant 0 : i32
    %c0_i32_0 = arith.constant 0 : i32
    %c0_i32_1 = arith.constant 0 : i32
    return %c0_i32, %c0_i32_0 : i32, i32
  }
  func.func @transform_12(%arg0: i32, %arg1: i32) -> (i32, i32, i32) {
    %c0_i32 = arith.constant 0 : i32
    %c0_i32_0 = arith.constant 0 : i32
    return %arg0, %arg1, %c0_i32 : i32, i32, i32
  }
}

</mosaic_0001>

<llo_original>
// kernel: tpu_custom_call.1
$region0: #{tpu_custom_call.1}
  #allocation0 [shape = 'u32[]', space=smem, size = 0x4, offset = 0x4, fixed_abs, tag = 'smem constant byte address 0x4 - core index']
  #allocation1 [shape = 'u32[144,128]{1,0:T(1,128)}', space=vmem, size = 0x12000, scoped, tag = 'internal scratch']
  #allocation2 [shape = 'f32[64,32]{1,0:T(8,128)}', space=vmem, size = 0x8000, scoped, tag = 'scratch operand']
  #allocation3 [shape = 'bf16[64,64]{1,0:T(8,128)(2,1)}', space=vmem, size = 0x4000, scoped, tag = 'scratch operand']
  %s0 = inlined_call_operand.vmem [shape: f32[2,64,32], index: 0, kind: input, shape index: {}]
  %s1 = inlined_call_operand.vmem [shape: s32[2,64,4], index: 1, kind: input, shape index: {}]
  %s2 = inlined_call_operand.vmem [shape: bf16[32,96], index: 2, kind: input, shape index: {}]
  %s3 = inlined_call_operand.vmem [shape: bf16[32,32], index: 3, kind: input, shape index: {}]
  %s4 = inlined_call_operand.vmem [shape: bf16[32,32], index: 4, kind: input, shape index: {}]
  %s5 = inlined_call_operand.vmem [shape: bf16[32,32], index: 5, kind: input, shape index: {}]
  %s6 = inlined_call_operand.vmem [shape: bf16[32,8], index: 6, kind: input, shape index: {}]
  %s7 = inlined_call_operand.vmem [shape: bf16[8,32], index: 7, kind: input, shape index: {}]
  %s8 = inlined_call_operand.vmem [shape: f32[1,32], index: 8, kind: input, shape index: {}]
  %s9 = inlined_call_operand.vmem [shape: f32[1,32], index: 9, kind: input, shape index: {}]
  %s10 = inlined_call_operand.vmem [shape: f32[1,32], index: 10, kind: input, shape index: {}]
  %s11 = inlined_call_operand.vmem [shape: f32[1,32], index: 11, kind: input, shape index: {}]
  %s12 = inlined_call_operand.vmem [shape: f32[2,64,32], index: 12, kind: output, shape index: {}]
  %s13 = sld [smem:[#allocation0]]
  $region85: #{tpu_custom_call.1} parent=0
    _
  %s15 = ssub.s32 1, %s13
  %s16 = scalar_select 0, %s15, %s13
  loop: start=0, step=1, limit=10
  $region2: #{tpu_custom_call.1} parent=0 // loop_pre_header
    _
  $region3: #{tpu_custom_call.1} parent=0 // loop_header
    %s18 = sphi 0, %s22
    %p19 = scmp.ge.s32.totalorder %s18, 10
    %s25 = sphi 0, %s37
    %s26 = sphi 0, %s33
    %s27 = sphi 0, %s25
    %s28 = sphi 0, %s26
    %s29 = sphi 0, %s27
    %s30 = sphi 0, %s28
    %s40 = sphi 0, %s42
    %s43 = sphi 0, %s40
    %s44 = sphi 0, %s43
    %s60 = sphi 0, %s44
    %s68 = sphi 0, %s70
    %s71 = sphi 0, %s68
    %s72 = sphi 0, %s71
    %s88 = sphi 0, %s72
    %s92 = sphi 0, %s92
    %s94 = sphi 0, %s92
    %s95 = sphi 0, %s94
    %s109 = sphi 0, %s95
    %s113 = sphi 0, %s113
    %s115 = sphi 0, %s113
    %s116 = sphi 0, %s115
    %s130 = sphi 0, %s116
    %s134 = sphi 0, %s134
    %s136 = sphi 0, %s134
    %s137 = sphi 0, %s136
    %s151 = sphi 0, %s137
    %s155 = sphi 0, %s155
    %s157 = sphi 0, %s155
    %s158 = sphi 0, %s157
    %s172 = sphi 0, %s158
    %s176 = sphi 0, %s176
    %s178 = sphi 0, %s176
    %s179 = sphi 0, %s178
    %s193 = sphi 0, %s179
    %s197 = sphi 0, %s197
    %s199 = sphi 0, %s197
    %s200 = sphi 0, %s199
    %s214 = sphi 0, %s200
    %s218 = sphi 0, %s218
    %s220 = sphi 0, %s218
    %s221 = sphi 0, %s220
    %s235 = sphi 0, %s221
    %s239 = sphi 0, %s239
    %s241 = sphi 0, %s239
    %s242 = sphi 0, %s241
    %s256 = sphi 0, %s242
    %s260 = sphi 0, %s260
    %s262 = sphi 0, %s260
    %s263 = sphi 0, %s262
    %s277 = sphi 0, %s263
    %s281 = sphi 0, %s281
    %s283 = sphi 0, %s281
    %s284 = sphi 0, %s283
    %s298 = sphi 0, %s284
    %s306 = sphi 0, %s308
    %s309 = sphi 0, %s306
    %s310 = sphi 0, %s309
    %s326 = sphi 0, %s310
  $region4: #{tpu_custom_call.1} parent=0 // loop_header_branch
    %21 = sbr.rel (%p19) target = $region8
  $region5: #{tpu_custom_call.1} parent=0 // loop_body
    %s23 = ssub.s32 %s18, 1
    %s24 = ssub.s32 %s18, 2
    %s31 = sadd.s32 1, %s26
    %p32 = scmp.ge.s32.totalorder %s31, 4
    %s33 = scalar_select %p32, 0, %s31
    %s34 = sadd.s32 1, %s25
    %s35 = scalar_select %p32, %s34, %s25
    %p36 = scmp.ge.s32.totalorder %s35, 2
    %s37 = scalar_select %p36, 0, %s35
    %s38 = ssub.s32 %s25, %s37
    %p39 = scmp.eq.s32.totalorder %s38, 0
    %s41 = sadd.s32 %s40, 1
    %s42 = scalar_select %p39, %s40, %s41
    %p45 = pneg %p39
    %p46 = scmp.eq.s32.totalorder %s18, 7
    %p47 = por %p45, %p46
    %p48 = scmp.ne.s32.totalorder %s40, %s43
    %p49 = scmp.eq.s32.totalorder %s18, 0
    %p50 = por %p48, %p49
    %p51 = scmp.ne.s32.totalorder %s40, %s43
    %p52 = scmp.eq.s32.totalorder %s23, 7
    %p53 = por %p51, %p52
    %p54 = scmp.ne.s32.totalorder %s43, %s44
    %p55 = scmp.eq.s32.totalorder %s23, 0
    %p56 = por %p54, %p55
    %p57 = scmp.ne.s32.totalorder %s43, %s44
    %p58 = scmp.eq.s32.totalorder %s24, 7
    %p59 = por %p57, %p58
    %p61 = scmp.ne.s32.totalorder %s44, %s60
    %p62 = scmp.eq.s32.totalorder %s24, 0
    %p63 = por %p61, %p62
    %s64 = ssub.s32 %s25, %s37
    %s65 = ssub.s32 %s26, %s33
    %s66 = sor.u32 %s64, %s65
    %p67 = scmp.eq.s32.totalorder %s66, 0
    %s69 = sadd.s32 %s68, 1
    %s70 = scalar_select %p67, %s68, %s69
    %p73 = pneg %p67
    %p74 = scmp.eq.s32.totalorder %s18, 7
    %p75 = por %p73, %p74
    %p76 = scmp.ne.s32.totalorder %s68, %s71
    %p77 = scmp.eq.s32.totalorder %s18, 0
    %p78 = por %p76, %p77
    %p79 = scmp.ne.s32.totalorder %s68, %s71
    %p80 = scmp.eq.s32.totalorder %s23, 7
    %p81 = por %p79, %p80
    %p82 = scmp.ne.s32.totalorder %s71, %s72
    %p83 = scmp.eq.s32.totalorder %s23, 0
    %p84 = por %p82, %p83
    %p85 = scmp.ne.s32.totalorder %s71, %s72
    %p86 = scmp.eq.s32.totalorder %s24, 7
    %p87 = por %p85, %p86
    %p89 = scmp.ne.s32.totalorder %s72, %s88
    %p90 = scmp.eq.s32.totalorder %s24, 0
    %p91 = por %p89, %p90
    %s93 = sadd.s32 %s92, 1
    %p96 = scmp.eq.s32.totalorder %s18, 7
    %p97 = scmp.ne.s32.totalorder %s92, %s94
    %p98 = scmp.eq.s32.totalorder %s18, 0
    %p99 = por %p97, %p98
    %p100 = scmp.ne.s32.totalorder %s92, %s94
    %p101 = scmp.eq.s32.totalorder %s23, 7
    %p102 = por %p100, %p101
    %p103 = scmp.ne.s32.totalorder %s94, %s95
    %p104 = scmp.eq.s32.totalorder %s23, 0
    %p105 = por %p103, %p104
    %p106 = scmp.ne.s32.totalorder %s94, %s95
    %p107 = scmp.eq.s32.totalorder %s24, 7
    %p108 = por %p106, %p107
    %p110 = scmp.ne.s32.totalorder %s95, %s109
    %p111 = scmp.eq.s32.totalorder %s24, 0
    %p112 = por %p110, %p111
    %s114 = sadd.s32 %s113, 1
    %p117 = scmp.eq.s32.totalorder %s18, 7
    %p118 = scmp.ne.s32.totalorder %s113, %s115
    %p119 = scmp.eq.s32.totalorder %s18, 0
    %p120 = por %p118, %p119
    %p121 = scmp.ne.s32.totalorder %s113, %s115
    %p122 = scmp.eq.s32.totalorder %s23, 7
    %p123 = por %p121, %p122
    %p124 = scmp.ne.s32.totalorder %s115, %s116
    %p125 = scmp.eq.s32.totalorder %s23, 0
    %p126 = por %p124, %p125
    %p127 = scmp.ne.s32.totalorder %s115, %s116
    %p128 = scmp.eq.s32.totalorder %s24, 7
    %p129 = por %p127, %p128
    %p131 = scmp.ne.s32.totalorder %s116, %s130
    %p132 = scmp.eq.s32.totalorder %s24, 0
    %p133 = por %p131, %p132
    %s135 = sadd.s32 %s134, 1
    %p138 = scmp.eq.s32.totalorder %s18, 7
    %p139 = scmp.ne.s32.totalorder %s134, %s136
    %p140 = scmp.eq.s32.totalorder %s18, 0
    %p141 = por %p139, %p140
    %p142 = scmp.ne.s32.totalorder %s134, %s136
    %p143 = scmp.eq.s32.totalorder %s23, 7
    %p144 = por %p142, %p143
    %p145 = scmp.ne.s32.totalorder %s136, %s137
    %p146 = scmp.eq.s32.totalorder %s23, 0
    %p147 = por %p145, %p146
    %p148 = scmp.ne.s32.totalorder %s136, %s137
    %p149 = scmp.eq.s32.totalorder %s24, 7
    %p150 = por %p148, %p149
    %p152 = scmp.ne.s32.totalorder %s137, %s151
    %p153 = scmp.eq.s32.totalorder %s24, 0
    %p154 = por %p152, %p153
    %s156 = sadd.s32 %s155, 1
    %p159 = scmp.eq.s32.totalorder %s18, 7
    %p160 = scmp.ne.s32.totalorder %s155, %s157
    %p161 = scmp.eq.s32.totalorder %s18, 0
    %p162 = por %p160, %p161
    %p163 = scmp.ne.s32.totalorder %s155, %s157
    %p164 = scmp.eq.s32.totalorder %s23, 7
    %p165 = por %p163, %p164
    %p166 = scmp.ne.s32.totalorder %s157, %s158
    %p167 = scmp.eq.s32.totalorder %s23, 0
    %p168 = por %p166, %p167
    %p169 = scmp.ne.s32.totalorder %s157, %s158
    %p170 = scmp.eq.s32.totalorder %s24, 7
    %p171 = por %p169, %p170
    %p173 = scmp.ne.s32.totalorder %s158, %s172
    %p174 = scmp.eq.s32.totalorder %s24, 0
    %p175 = por %p173, %p174
    %s177 = sadd.s32 %s176, 1
    %p180 = scmp.eq.s32.totalorder %s18, 7
    %p181 = scmp.ne.s32.totalorder %s176, %s178
    %p182 = scmp.eq.s32.totalorder %s18, 0
    %p183 = por %p181, %p182
    %p184 = scmp.ne.s32.totalorder %s176, %s178
    %p185 = scmp.eq.s32.totalorder %s23, 7
    %p186 = por %p184, %p185
    %p187 = scmp.ne.s32.totalorder %s178, %s179
    %p188 = scmp.eq.s32.totalorder %s23, 0
    %p189 = por %p187, %p188
    %p190 = scmp.ne.s32.totalorder %s178, %s179
    %p191 = scmp.eq.s32.totalorder %s24, 7
    %p192 = por %p190, %p191
    %p194 = scmp.ne.s32.totalorder %s179, %s193
    %p195 = scmp.eq.s32.totalorder %s24, 0
    %p196 = por %p194, %p195
    %s198 = sadd.s32 %s197, 1
    %p201 = scmp.eq.s32.totalorder %s18, 7
    %p202 = scmp.ne.s32.totalorder %s197, %s199
    %p203 = scmp.eq.s32.totalorder %s18, 0
    %p204 = por %p202, %p203
    %p205 = scmp.ne.s32.totalorder %s197, %s199
    %p206 = scmp.eq.s32.totalorder %s23, 7
    %p207 = por %p205, %p206
    %p208 = scmp.ne.s32.totalorder %s199, %s200
    %p209 = scmp.eq.s32.totalorder %s23, 0
    %p210 = por %p208, %p209
    %p211 = scmp.ne.s32.totalorder %s199, %s200
    %p212 = scmp.eq.s32.totalorder %s24, 7
    %p213 = por %p211, %p212
    %p215 = scmp.ne.s32.totalorder %s200, %s214
    %p216 = scmp.eq.s32.totalorder %s24, 0
    %p217 = por %p215, %p216
    %s219 = sadd.s32 %s218, 1
    %p222 = scmp.eq.s32.totalorder %s18, 7
    %p223 = scmp.ne.s32.totalorder %s218, %s220
    %p224 = scmp.eq.s32.totalorder %s18, 0
    %p225 = por %p223, %p224
    %p226 = scmp.ne.s32.totalorder %s218, %s220
    %p227 = scmp.eq.s32.totalorder %s23, 7
    %p228 = por %p226, %p227
    %p229 = scmp.ne.s32.totalorder %s220, %s221
    %p230 = scmp.eq.s32.totalorder %s23, 0
    %p231 = por %p229, %p230
    %p232 = scmp.ne.s32.totalorder %s220, %s221
    %p233 = scmp.eq.s32.totalorder %s24, 7
    %p234 = por %p232, %p233
    %p236 = scmp.ne.s32.totalorder %s221, %s235
    %p237 = scmp.eq.s32.totalorder %s24, 0
    %p238 = por %p236, %p237
    %s240 = sadd.s32 %s239, 1
    %p243 = scmp.eq.s32.totalorder %s18, 7
    %p244 = scmp.ne.s32.totalorder %s239, %s241
    %p245 = scmp.eq.s32.totalorder %s18, 0
    %p246 = por %p244, %p245
    %p247 = scmp.ne.s32.totalorder %s239, %s241
    %p248 = scmp.eq.s32.totalorder %s23, 7
    %p249 = por %p247, %p248
    %p250 = scmp.ne.s32.totalorder %s241, %s242
    %p251 = scmp.eq.s32.totalorder %s23, 0
    %p252 = por %p250, %p251
    %p253 = scmp.ne.s32.totalorder %s241, %s242
    %p254 = scmp.eq.s32.totalorder %s24, 7
    %p255 = por %p253, %p254
    %p257 = scmp.ne.s32.totalorder %s242, %s256
    %p258 = scmp.eq.s32.totalorder %s24, 0
    %p259 = por %p257, %p258
    %s261 = sadd.s32 %s260, 1
    %p264 = scmp.eq.s32.totalorder %s18, 7
    %p265 = scmp.ne.s32.totalorder %s260, %s262
    %p266 = scmp.eq.s32.totalorder %s18, 0
    %p267 = por %p265, %p266
    %p268 = scmp.ne.s32.totalorder %s260, %s262
    %p269 = scmp.eq.s32.totalorder %s23, 7
    %p270 = por %p268, %p269
    %p271 = scmp.ne.s32.totalorder %s262, %s263
    %p272 = scmp.eq.s32.totalorder %s23, 0
    %p273 = por %p271, %p272
    %p274 = scmp.ne.s32.totalorder %s262, %s263
    %p275 = scmp.eq.s32.totalorder %s24, 7
    %p276 = por %p274, %p275
    %p278 = scmp.ne.s32.totalorder %s263, %s277
    %p279 = scmp.eq.s32.totalorder %s24, 0
    %p280 = por %p278, %p279
    %s282 = sadd.s32 %s281, 1
    %p285 = scmp.eq.s32.totalorder %s18, 7
    %p286 = scmp.ne.s32.totalorder %s281, %s283
    %p287 = scmp.eq.s32.totalorder %s18, 0
    %p288 = por %p286, %p287
    %p289 = scmp.ne.s32.totalorder %s281, %s283
    %p290 = scmp.eq.s32.totalorder %s23, 7
    %p291 = por %p289, %p290
    %p292 = scmp.ne.s32.totalorder %s283, %s284
    %p293 = scmp.eq.s32.totalorder %s23, 0
    %p294 = por %p292, %p293
    %p295 = scmp.ne.s32.totalorder %s283, %s284
    %p296 = scmp.eq.s32.totalorder %s24, 7
    %p297 = por %p295, %p296
    %p299 = scmp.ne.s32.totalorder %s284, %s298
    %p300 = scmp.eq.s32.totalorder %s24, 0
    %p301 = por %p299, %p300
    %s302 = ssub.s32 %s25, %s37
    %s303 = ssub.s32 %s26, %s33
    %s304 = sor.u32 %s302, %s303
    %p305 = scmp.eq.s32.totalorder %s304, 0
    %s307 = sadd.s32 %s306, 1
    %s308 = scalar_select %p305, %s306, %s307
    %p311 = pneg %p305
    %p312 = scmp.eq.s32.totalorder %s18, 7
    %p313 = por %p311, %p312
    %p314 = scmp.ne.s32.totalorder %s306, %s309
    %p315 = scmp.eq.s32.totalorder %s18, 0
    %p316 = por %p314, %p315
    %p317 = scmp.ne.s32.totalorder %s306, %s309
    %p318 = scmp.eq.s32.totalorder %s23, 7
    %p319 = por %p317, %p318
    %p320 = scmp.ne.s32.totalorder %s309, %s310
    %p321 = scmp.eq.s32.totalorder %s23, 0
    %p322 = por %p320, %p321
    %p323 = scmp.ne.s32.totalorder %s309, %s310
    %p324 = scmp.eq.s32.totalorder %s24, 7
    %p325 = por %p323, %p324
    %p327 = scmp.ne.s32.totalorder %s310, %s326
    %p328 = scmp.eq.s32.totalorder %s24, 0
    %p329 = por %p327, %p328
    %p330 = scmp.le.s32.totalorder 1, %s18
    %p331 = scmp.lt.s32.totalorder %s18, 9
    %p332 = pnand %p330, %p331
    %p333 = pneg %p332
    // Predicated region
    $region9: #{tpu_custom_call.1} parent=5 // pred_check
      _
    $region10: #{tpu_custom_call.1} parent=5 // pred_check_branch
      %335 = sbr.rel (%p332) target = $region12
    $region11: #{tpu_custom_call.1} parent=5 // pred_region
      %s336 = ssub.s32 %s18, 1
      // Predicated region
      $region13: #{tpu_custom_call.1} parent=11 // pred_check
        %p337 = pneg %p105
      $region14: #{tpu_custom_call.1} parent=11 // pred_check_branch
        %339 = sbr.rel (%p337) target = $region16
      $region15: #{tpu_custom_call.1} parent=11 // pred_region
        _
      $region16: #{tpu_custom_call.1} parent=11 // pred_fallthru
        _
      // Predicated region
      $region17: #{tpu_custom_call.1} parent=11 // pred_check
        %p340 = pneg %p126
      $region18: #{tpu_custom_call.1} parent=11 // pred_check_branch
        %342 = sbr.rel (%p340) target = $region20
      $region19: #{tpu_custom_call.1} parent=11 // pred_region
        _
      $region20: #{tpu_custom_call.1} parent=11 // pred_fallthru
        _
      // Predicated region
      $region21: #{tpu_custom_call.1} parent=11 // pred_check
        %p343 = pneg %p147
      $region22: #{tpu_custom_call.1} parent=11 // pred_check_branch
        %345 = sbr.rel (%p343) target = $region24
      $region23: #{tpu_custom_call.1} parent=11 // pred_region
        _
      $region24: #{tpu_custom_call.1} parent=11 // pred_fallthru
        _
      // Predicated region
      $region25: #{tpu_custom_call.1} parent=11 // pred_check
        %p346 = pneg %p168
      $region26: #{tpu_custom_call.1} parent=11 // pred_check_branch
        %348 = sbr.rel (%p346) target = $region28
      $region27: #{tpu_custom_call.1} parent=11 // pred_region
        _
      $region28: #{tpu_custom_call.1} parent=11 // pred_fallthru
        _
      // Predicated region
      $region29: #{tpu_custom_call.1} parent=11 // pred_check
        %p349 = pneg %p189
      $region30: #{tpu_custom_call.1} parent=11 // pred_check_branch
        %351 = sbr.rel (%p349) target = $region32
      $region31: #{tpu_custom_call.1} parent=11 // pred_region
        _
      $region32: #{tpu_custom_call.1} parent=11 // pred_fallthru
        _
      // Predicated region
      $region33: #{tpu_custom_call.1} parent=11 // pred_check
        %p352 = pneg %p210
      $region34: #{tpu_custom_call.1} parent=11 // pred_check_branch
        %354 = sbr.rel (%p352) target = $region36
      $region35: #{tpu_custom_call.1} parent=11 // pred_region
        _
      $region36: #{tpu_custom_call.1} parent=11 // pred_fallthru
        _
      // Predicated region
      $region37: #{tpu_custom_call.1} parent=11 // pred_check
        %p355 = pneg %p231
      $region38: #{tpu_custom_call.1} parent=11 // pred_check_branch
        %357 = sbr.rel (%p355) target = $region40
      $region39: #{tpu_custom_call.1} parent=11 // pred_region
        _
      $region40: #{tpu_custom_call.1} parent=11 // pred_fallthru
        _
      // Predicated region
      $region41: #{tpu_custom_call.1} parent=11 // pred_check
        %p358 = pneg %p252
      $region42: #{tpu_custom_call.1} parent=11 // pred_check_branch
        %360 = sbr.rel (%p358) target = $region44
      $region43: #{tpu_custom_call.1} parent=11 // pred_region
        _
      $region44: #{tpu_custom_call.1} parent=11 // pred_fallthru
        _
      // Predicated region
      $region45: #{tpu_custom_call.1} parent=11 // pred_check
        %p361 = pneg %p273
      $region46: #{tpu_custom_call.1} parent=11 // pred_check_branch
        %363 = sbr.rel (%p361) target = $region48
      $region47: #{tpu_custom_call.1} parent=11 // pred_region
        _
      $region48: #{tpu_custom_call.1} parent=11 // pred_fallthru
        _
      // Predicated region
      $region49: #{tpu_custom_call.1} parent=11 // pred_check
        %p364 = pneg %p294
      $region50: #{tpu_custom_call.1} parent=11 // pred_check_branch
        %366 = sbr.rel (%p364) target = $region52
      $region51: #{tpu_custom_call.1} parent=11 // pred_region
        _
      $region52: #{tpu_custom_call.1} parent=11 // pred_fallthru
        _
    $region12: #{tpu_custom_call.1} parent=5 // pred_fallthru
      _
    %p367 = scmp.lt.s32.totalorder %s18, 8
    // Predicated region
    $region53: #{tpu_custom_call.1} parent=5 // pred_check
      %p368 = pneg %p367
    $region54: #{tpu_custom_call.1} parent=5 // pred_check_branch
      %370 = sbr.rel (%p368) target = $region56
    $region55: #{tpu_custom_call.1} parent=5 // pred_region
      // Predicated region
      $region57: #{tpu_custom_call.1} parent=55 // pred_check
        %p371 = pneg %p50
      $region58: #{tpu_custom_call.1} parent=55 // pred_check_branch
        %373 = sbr.rel (%p371) target = $region60
      $region59: #{tpu_custom_call.1} parent=55 // pred_region
        %p374 = scmp.lt.s32.totalorder %s25, 1
        %s375 = scalar_select %p374, %s25, 1
        %s376 = smul.addr %s375, 8
        %s377 = smul.addr %s376, 8
        %s378 = scalar_lea.vmem %s0, %s377
      $region60: #{tpu_custom_call.1} parent=55 // pred_fallthru
        _
      // Predicated region
      $region61: #{tpu_custom_call.1} parent=55 // pred_check
        %p379 = pneg %p78
      $region62: #{tpu_custom_call.1} parent=55 // pred_check_branch
        %381 = sbr.rel (%p379) target = $region64
      $region63: #{tpu_custom_call.1} parent=55 // pred_region
        %s382 = smul.u32 2, %s26
        %p383 = scmp.lt.s32.totalorder %s25, 1
        %s384 = scalar_select %p383, %s25, 1
        %p385 = scmp.lt.s32.totalorder %s382, 7
        %s386 = scalar_select %p385, %s382, 7
        %s387 = smul.addr %s384, 8
        %s388 = sadd.s32 %s386, %s387
        %s389 = smul.addr %s388, 8
        %s390 = scalar_lea.vmem %s1, %s389
        %s391 = smul.u32 2, %s26
      $region64: #{tpu_custom_call.1} parent=55 // pred_fallthru
        _
    $region56: #{tpu_custom_call.1} parent=5 // pred_fallthru
      _
    %p392 = scmp.le.s32.totalorder 1, %s18
    %p393 = scmp.lt.s32.totalorder %s18, 9
    %p394 = pnand %p392, %p393
    %p395 = pneg %p394
    // Predicated region
    $region65: #{tpu_custom_call.1} parent=5 // pred_check
      _
    $region66: #{tpu_custom_call.1} parent=5 // pred_check_branch
      %397 = sbr.rel (%p394) target = $region68
    $region67: #{tpu_custom_call.1} parent=5 // pred_region
      %s398 = ssub.s32 %s18, 1
      %p399 = scmp.lt.s32.totalorder %s27, 1
      %s400 = scalar_select %p399, %s27, 1
      %s401 = smul.addr %s400, 8
      %s402 = smul.addr %s401, 8
      %s403 = scalar_lea.vmem %s0, %s402
      %p404 = pneg %p56
      %p405 = pneg %p53
      %s406 = smul.u32 2, %s28
      %p407 = scmp.lt.s32.totalorder %s27, 1
      %s408 = scalar_select %p407, %s27, 1
      %p409 = scmp.lt.s32.totalorder %s406, 7
      %s410 = scalar_select %p409, %s406, 7
      %s411 = smul.addr %s408, 8
      %s412 = sadd.s32 %s410, %s411
      %s413 = smul.addr %s412, 8
      %s414 = scalar_lea.vmem %s1, %s413
      %p415 = pneg %p84
      %p416 = pneg %p81
      %p417 = pneg %p105
      %p418 = pneg %p102
      %p419 = pneg %p126
      %p420 = pneg %p123
      %p421 = pneg %p147
      %p422 = pneg %p144
      %p423 = pneg %p168
      %p424 = pneg %p165
      %p425 = pneg %p189
      %p426 = pneg %p186
      %p427 = pneg %p210
      %p428 = pneg %p207
      %p429 = pneg %p231
      %p430 = pneg %p228
      %p431 = pneg %p252
      %p432 = pneg %p249
      %p433 = pneg %p273
      %p434 = pneg %p270
      %p435 = pneg %p294
      %p436 = pneg %p291
      %p437 = pneg %p322
      %p438 = pneg %p319
      %s439 = smul.u32 2, %s28
      %p440 = scmp.lt.s32.totalorder %s27, 1
      %s441 = scalar_select %p440, %s27, 1
      %p442 = scmp.lt.s32.totalorder %s439, 7
      %s443 = scalar_select %p442, %s439, 7
      %s444 = smul.addr %s441, 8
      %s445 = sadd.s32 %s443, %s444
      %s446 = smul.addr %s445, 8
      %s447 = scalar_lea.vmem %s12, %s446
      %p448 = scmp.lt.s32.totalorder %s27, 1
      %s449 = scalar_select %p448, %s27, 1
      %s450 = smul.addr %s449, 8
      %s451 = smul.addr %s450, 8
      %s452 = scalar_lea.vmem %s0, %s451
      %s453 = smul.u32 2, %s28
      %p454 = scmp.lt.s32.totalorder %s27, 1
      %s455 = scalar_select %p454, %s27, 1
      %p456 = scmp.lt.s32.totalorder %s453, 7
      %s457 = scalar_select %p456, %s453, 7
      %s458 = smul.addr %s455, 8
      %s459 = sadd.s32 %s457, %s458
      %s460 = smul.addr %s459, 8
      %s461 = scalar_lea.vmem %s1, %s460
      %s462 = smul.u32 2, %s28
      %s463 = smul.u32 2, %s28
      %p464 = scmp.lt.s32.totalorder %s27, 1
      %s465 = scalar_select %p464, %s27, 1
      %p466 = scmp.lt.s32.totalorder %s463, 7
      %s467 = scalar_select %p466, %s463, 7
      %s468 = smul.addr %s465, 8
      %s469 = sadd.s32 %s467, %s468
      %s470 = smul.addr %s469, 8
      %s471 = scalar_lea.vmem %s12, %s470
      %s472 = smul.u32 2, %s28
      %p474 = scmp.eq.s32.totalorder %s28, 0
      // Predicated region
      $region69: #{tpu_custom_call.1} parent=67 // pred_check
        %p475 = pneg %p474
      $region70: #{tpu_custom_call.1} parent=67 // pred_check_branch
        %477 = sbr.rel (%p475) target = $region72
      $region71: #{tpu_custom_call.1} parent=67 // pred_region
        %v478 = vld [vmem:[%s452] sm:$0xff]
        %v479 = vld [vmem:[%s452 + $0x8] sm:$0xff]
        %v480 = vld [vmem:[%s452 + $0x10] sm:$0xff]
        %v481 = vld [vmem:[%s452 + $0x18] sm:$0xff]
        %v482 = vld [vmem:[%s452 + $0x20] sm:$0xff]
        %v483 = vld [vmem:[%s452 + $0x28] sm:$0xff]
        %v484 = vld [vmem:[%s452 + $0x30] sm:$0xff]
        %v485 = vld [vmem:[%s452 + $0x38] sm:$0xff]
        %v486 = vld [vmem:[%s8] sm:$0x1]
        %v487 = vld [vmem:[%s9] sm:$0x1]
        %vm488 = vcmask 261120
        %v489 = vsel %vm488, %v478, 0.0
        %490 = vadd.xlane.f32.xlu0 %v489
        %v491 = vpop.xlane.xlu0 %490
        %v492 = vsel %vm488, %v479, 0.0
        %493 = vadd.xlane.f32.xlu0 %v492
        %v494 = vpop.xlane.xlu0 %493
        %v495 = vsel %vm488, %v480, 0.0
        %496 = vadd.xlane.f32.xlu0 %v495
        %v497 = vpop.xlane.xlu0 %496
        %v498 = vsel %vm488, %v481, 0.0
        %499 = vadd.xlane.f32.xlu0 %v498
        %v500 = vpop.xlane.xlu0 %499
        %v501 = vsel %vm488, %v482, 0.0
        %502 = vadd.xlane.f32.xlu0 %v501
        %v503 = vpop.xlane.xlu0 %502
        %v504 = vsel %vm488, %v483, 0.0
        %505 = vadd.xlane.f32.xlu0 %v504
        %v506 = vpop.xlane.xlu0 %505
        %v507 = vsel %vm488, %v484, 0.0
        %508 = vadd.xlane.f32.xlu0 %v507
        %v509 = vpop.xlane.xlu0 %508
        %v510 = vsel %vm488, %v485, 0.0
        %511 = vadd.xlane.f32.xlu0 %v510
        %v512 = vpop.xlane.xlu0 %511
        %v513 = vrcp.pop 32.0
        %v514 = vmul.f32 %v491, %v513
        %v515 = vmul.f32 %v494, %v513
        %v516 = vmul.f32 %v497, %v513
        %v517 = vmul.f32 %v500, %v513
        %v518 = vmul.f32 %v503, %v513
        %v519 = vmul.f32 %v506, %v513
        %v520 = vmul.f32 %v509, %v513
        %v521 = vmul.f32 %v512, %v513
        %v522 = vsub.f32 %v478, %v514
        %v523 = vsub.f32 %v479, %v515
        %v524 = vsub.f32 %v480, %v516
        %v525 = vsub.f32 %v481, %v517
        %v526 = vsub.f32 %v482, %v518
        %v527 = vsub.f32 %v483, %v519
        %v528 = vsub.f32 %v484, %v520
        %v529 = vsub.f32 %v485, %v521
        %v530 = vmul.f32 %v522, %v522
        %v531 = vmul.f32 %v523, %v523
        %v532 = vmul.f32 %v524, %v524
        %v533 = vmul.f32 %v525, %v525
        %v534 = vmul.f32 %v526, %v526
        %v535 = vmul.f32 %v527, %v527
        %v536 = vmul.f32 %v528, %v528
        %v537 = vmul.f32 %v529, %v529
        %v538 = vsel %vm488, %v530, 0.0
        %539 = vadd.xlane.f32.xlu0 %v538
        %v540 = vpop.xlane.xlu0 %539
        %v541 = vsel %vm488, %v531, 0.0
        %542 = vadd.xlane.f32.xlu0 %v541
        %v543 = vpop.xlane.xlu0 %542
        %v544 = vsel %vm488, %v532, 0.0
        %545 = vadd.xlane.f32.xlu0 %v544
        %v546 = vpop.xlane.xlu0 %545
        %v547 = vsel %vm488, %v533, 0.0
        %548 = vadd.xlane.f32.xlu0 %v547
        %v549 = vpop.xlane.xlu0 %548
        %v550 = vsel %vm488, %v534, 0.0
        %551 = vadd.xlane.f32.xlu0 %v550
        %v552 = vpop.xlane.xlu0 %551
        %v553 = vsel %vm488, %v535, 0.0
        %554 = vadd.xlane.f32.xlu0 %v553
        %v555 = vpop.xlane.xlu0 %554
        %v556 = vsel %vm488, %v536, 0.0
        %557 = vadd.xlane.f32.xlu0 %v556
        %v558 = vpop.xlane.xlu0 %557
        %v559 = vsel %vm488, %v537, 0.0
        %560 = vadd.xlane.f32.xlu0 %v559
        %v561 = vpop.xlane.xlu0 %560
        %v562 = vmul.f32 %v540, %v513
        %v563 = vmul.f32 %v543, %v513
        %v564 = vmul.f32 %v546, %v513
        %v565 = vmul.f32 %v549, %v513
        %v566 = vmul.f32 %v552, %v513
        %v567 = vmul.f32 %v555, %v513
        %v568 = vmul.f32 %v558, %v513
        %v569 = vmul.f32 %v561, %v513
        %v570 = vadd.f32 %v562, 1e-05
        %v571 = vadd.f32 %v563, 1e-05
        %v572 = vadd.f32 %v564, 1e-05
        %v573 = vadd.f32 %v565, 1e-05
        %v574 = vadd.f32 %v566, 1e-05
        %v575 = vadd.f32 %v567, 1e-05
        %v576 = vadd.f32 %v568, 1e-05
        %v577 = vadd.f32 %v569, 1e-05
        %v578 = vrsqrt.pop %v570
        %v579 = vrsqrt.pop %v571
        %v580 = vrsqrt.pop %v572
        %v581 = vrsqrt.pop %v573
        %v582 = vrsqrt.pop %v574
        %v583 = vrsqrt.pop %v575
        %v584 = vrsqrt.pop %v576
        %v585 = vrsqrt.pop %v577
        %v586 = vmul.f32 %v522, %v578
        %v587 = vmul.f32 %v523, %v579
        %v588 = vmul.f32 %v524, %v580
        %v589 = vmul.f32 %v525, %v581
        %v590 = vmul.f32 %v526, %v582
        %v591 = vmul.f32 %v527, %v583
        %v592 = vmul.f32 %v528, %v584
        %v593 = vmul.f32 %v529, %v585
        %v595 = vlaneseq
        %v596 = vshrl.u32 %v595, 7
        %v597 = vsub.s32 0, %v596
        %v598 = vrot.slane %v486, %v597
        %v600 = vmul.f32 %v586, %v598
        %v601 = vmul.f32 %v587, %v598
        %v602 = vmul.f32 %v588, %v598
        %v603 = vmul.f32 %v589, %v598
        %v604 = vmul.f32 %v590, %v598
        %v605 = vmul.f32 %v591, %v598
        %v606 = vmul.f32 %v592, %v598
        %v607 = vmul.f32 %v593, %v598
        %v609 = vlaneseq
        %v610 = vshrl.u32 %v609, 7
        %v611 = vsub.s32 0, %v610
        %v612 = vrot.slane %v487, %v611
        %v614 = vadd.f32 %v600, %v612
        %v615 = vadd.f32 %v601, %v612
        %v616 = vadd.f32 %v602, %v612
        %v617 = vadd.f32 %v603, %v612
        %v618 = vadd.f32 %v604, %v612
        %v619 = vadd.f32 %v605, %v612
        %v620 = vadd.f32 %v606, %v612
        %v621 = vadd.f32 %v607, %v612
        %v622 = vpack.c.bf16 %v615, %v614
        %v623 = vpack.c.bf16 %v617, %v616
        %v624 = vpack.c.bf16 %v619, %v618
        %v625 = vpack.c.bf16 %v621, %v620
        %v626 = vld [vmem:[%s2] sm:$0xf]
        %v627 = vld [vmem:[%s2 + $0x4] sm:$0xf]
        %v628 = vld [vmem:[%s2 + $0x8] sm:$0xf]
        %v629 = vld [vmem:[%s2 + $0xc] sm:$0xf]
        %v634 = vunpack.c.l.b16 %v626
        %v635 = vunpack.c.l.b16 %v627
        %v636 = vunpack.c.l.b16 %v628
        %v637 = vunpack.c.l.b16 %v629
        %v638 = vpack.c.b16 %v635, %v634
        %v639 = vpack.c.b16 %v637, %v636
        %v643 = vsel %vm488, %v622, 0
        %v646 = vsel %vm488, %v623, 0
        %v649 = vsel %vm488, %v624, 0
        %v652 = vsel %vm488, %v625, 0
        %654 = vmatprep.subr.bf16.mxu0 0
        %655 = vmatpush1.bf16.msra.mxu0 0
        %656 = vmatprep.subr.bf16.mxu0 0
        %657 = vmatpush1.bf16.msra.mxu0 0
        %658 = vmatprep.subr.bf16.mxu0 0
        %659 = vmatpush1.bf16.msra.mxu0 0
        %660 = vmatprep.subr.bf16.mxu0 0
        %661 = vmatpush1.bf16.msra.mxu0 0
        %662 = vmatprep.subr.bf16.mxu0 0
        %663 = vmatpush1.bf16.msra.mxu0 0
        %664 = vmatprep.subr.bf16.mxu0 0
        %665 = vmatpush1.bf16.msra.mxu0 0
        %666 = vmatprep.subr.bf16.mxu0 0
        %667 = vmatpush1.bf16.msra.mxu0 %v639
        %668 = vmatprep.subr.bf16.mxu0 0
        %669 = vmatpush1.bf16.msra.mxu0 %v638
        %670 = vmatprep.subr.bf16.mxu0 0
        %671 = vmatpush2.bf16.msra.mxu0 0
        %672 = vmatprep.subr.bf16.mxu0 0
        %673 = vmatpush2.bf16.msra.mxu0 0
        %674 = vmatprep.subr.bf16.mxu0 0
        %675 = vmatpush2.bf16.msra.mxu0 0
        %676 = vmatprep.subr.bf16.mxu0 0
        %677 = vmatpush2.bf16.msra.mxu0 0
        %678 = vmatprep.subr.bf16.mxu0 0
        %679 = vmatpush2.bf16.msra.mxu0 0
        %680 = vmatprep.subr.bf16.mxu0 0
        %681 = vmatpush2.bf16.msra.mxu0 0
        %682 = vmatprep.subr.bf16.mxu0 0
        %683 = vmatpush2.bf16.msra.mxu0 0
        %684 = vmatprep.subr.bf16.mxu0 0
        %685 = vmatpush2.bf16.msra.mxu0 0
        %686 = vmatprep.mubr.bf16.mxu0 0
        %687 = vmatmul.mubr.bf16.gmra.mxu0 %v643
        %v688 = vpop.f32.mrf.mxu0
        %v689 = vadd.f32 0.0, %v688
        %v690 = vpop.f32.mrf.mxu0
        %v691 = vpop.f32.mrf.mxu0
        %v692 = vadd.f32 0.0, %v691
        %v693 = vpop.f32.mrf.mxu0
        %694 = vmatprep.mubr.bf16.mxu0 0
        %695 = vmatmul.mubr.bf16.gmra.mxu0 %v646
        %v696 = vpop.f32.mrf.mxu0
        %v697 = vadd.f32 0.0, %v696
        %v698 = vpop.f32.mrf.mxu0
        %v699 = vpop.f32.mrf.mxu0
        %v700 = vadd.f32 0.0, %v699
        %v701 = vpop.f32.mrf.mxu0
        %702 = vmatprep.mubr.bf16.mxu0 0
        %703 = vmatmul.mubr.bf16.gmra.mxu0 %v649
        %v704 = vpop.f32.mrf.mxu0
        %v705 = vadd.f32 0.0, %v704
        %v706 = vpop.f32.mrf.mxu0
        %v707 = vpop.f32.mrf.mxu0
        %v708 = vadd.f32 0.0, %v707
        %v709 = vpop.f32.mrf.mxu0
        %710 = vmatprep.mubr.bf16.mxu0 0
        %711 = vmatmul.mubr.bf16.gmra.mxu0 %v652
        %v712 = vpop.f32.mrf.mxu0
        %v713 = vadd.f32 0.0, %v712
        %v714 = vpop.f32.mrf.mxu0
        %v715 = vpop.f32.mrf.mxu0
        %v716 = vadd.f32 0.0, %v715
        %v717 = vpop.f32.mrf.mxu0
        %718 = vdwg.mxu0
        %719 = vst.msk [vmem:[#allocation2] sm:$0xff] %vm488, %v689
        %720 = vst.msk [vmem:[#allocation2 + $0x8] sm:$0xff] %vm488, %v692
        %721 = vst.msk [vmem:[#allocation2 + $0x10] sm:$0xff] %vm488, %v697
        %722 = vst.msk [vmem:[#allocation2 + $0x18] sm:$0xff] %vm488, %v700
        %723 = vst.msk [vmem:[#allocation2 + $0x20] sm:$0xff] %vm488, %v705
        %724 = vst.msk [vmem:[#allocation2 + $0x28] sm:$0xff] %vm488, %v708
        %725 = vst.msk [vmem:[#allocation2 + $0x30] sm:$0xff] %vm488, %v713
        %726 = vst.msk [vmem:[#allocation2 + $0x38] sm:$0xff] %vm488, %v716
        %v727 = vpack.c.bf16 %v692, %v689
        %v728 = vpack.c.bf16 %v700, %v697
        %v729 = vpack.c.bf16 %v708, %v705
        %v730 = vpack.c.bf16 %v716, %v713
        %v735 = vunpack.c.l.b16 %v727
        %v736 = vunpack.c.h.b16 %v727
        %v737 = vunpack.c.l.b16 %v728
        %v738 = vunpack.c.h.b16 %v728
        %v739 = vunpack.c.l.b16 %v729
        %v740 = vunpack.c.h.b16 %v729
        %v741 = vunpack.c.l.b16 %v730
        %v742 = vunpack.c.h.b16 %v730
        %v743 = vpack.c.b16 %v735, %v735
        %v744 = vpack.c.b16 %v736, %v736
        %v745 = vpack.c.b16 %v737, %v737
        %v746 = vpack.c.b16 %v738, %v738
        %v747 = vpack.c.b16 %v739, %v739
        %v748 = vpack.c.b16 %v740, %v740
        %v749 = vpack.c.b16 %v741, %v741
        %v750 = vpack.c.b16 %v742, %v742
        %751 = vrot.lane.b32.xlu0 %v743, 96
        %v752 = vpop.permute.xlu0 %751
        %753 = vrot.lane.b32.xlu0 %v744, 96
        %v754 = vpop.permute.xlu0 %753
        %755 = vrot.lane.b32.xlu0 %v745, 96
        %v756 = vpop.permute.xlu0 %755
        %757 = vrot.lane.b32.xlu0 %v746, 96
        %v758 = vpop.permute.xlu0 %757
        %759 = vrot.lane.b32.xlu0 %v747, 96
        %v760 = vpop.permute.xlu0 %759
        %761 = vrot.lane.b32.xlu0 %v748, 96
        %v762 = vpop.permute.xlu0 %761
        %763 = vrot.lane.b32.xlu0 %v749, 96
        %v764 = vpop.permute.xlu0 %763
        %765 = vrot.lane.b32.xlu0 %v750, 96
        %v766 = vpop.permute.xlu0 %765
        %vm775 = vcmask 519168
        %776 = vst.msk [vmem:[#allocation3] sm:$0xf] %vm775, %v752
        %777 = vst.msk [vmem:[#allocation3 + $0x4] sm:$0xf] %vm775, %v754
        %778 = vst.msk [vmem:[#allocation3 + $0x8] sm:$0xf] %vm775, %v756
        %779 = vst.msk [vmem:[#allocation3 + $0xc] sm:$0xf] %vm775, %v758
        %780 = vst.msk [vmem:[#allocation3 + $0x10] sm:$0xf] %vm775, %v760
        %781 = vst.msk [vmem:[#allocation3 + $0x14] sm:$0xf] %vm775, %v762
        %782 = vst.msk [vmem:[#allocation3 + $0x18] sm:$0xf] %vm775, %v764
        %783 = vst.msk [vmem:[#allocation3 + $0x1c] sm:$0xf] %vm775, %v766
      $region72: #{tpu_custom_call.1} parent=67 // pred_fallthru
        _
      %s784 = smul.u32 %s28, 16
      %s785 = scalar_lea.vmem [#allocation2], %s784
      %v786 = vld [vmem:[%s785] sm:$0xff]
      %v787 = vld [vmem:[%s785 + $0x8] sm:$0xff]
      %v788 = vld [vmem:[#allocation3] sm:$0xf]
      %v789 = vld [vmem:[#allocation3 + $0x4] sm:$0xf]
      %v790 = vld [vmem:[#allocation3 + $0x8] sm:$0xf]
      %v791 = vld [vmem:[#allocation3 + $0xc] sm:$0xf]
      %v792 = vld [vmem:[#allocation3 + $0x10] sm:$0xf]
      %v793 = vld [vmem:[#allocation3 + $0x14] sm:$0xf]
      %v794 = vld [vmem:[#allocation3 + $0x18] sm:$0xf]
      %v795 = vld [vmem:[#allocation3 + $0x1c] sm:$0xf]
      %v796 = vld [vmem:[%s6] sm:$0xf]
      %v797 = vld [vmem:[%s6 + $0x4] sm:$0xf]
      %v798 = vld [vmem:[%s6 + $0x8] sm:$0xf]
      %v799 = vld [vmem:[%s6 + $0xc] sm:$0xf]
      %v800 = vld [vmem:[%s7] sm:$0xf]
      %v801 = vld [vmem:[%s461] sm:$0xff]
      %v802 = vld [vmem:[%s461 + $0x8] sm:$0xff]
      %v803 = vlaneseq
      %v804 = vand.u32 %v803, 127
      %805 = vset.pattern.permute.xlu0 0
      %806 = vperm.xlu0 %805, %v801
      %v807 = vpop.permute.xlu0 %806
      %808 = vset.pattern.permute.xlu0 0
      %809 = vperm.xlu0 %808, %v802
      %v810 = vpop.permute.xlu0 %809
      %vm811 = vcmp.eq.s32.totalorder %v804, %v807
      %vm812 = vcmp.eq.s32.totalorder %v804, %v810
      %v813 = vsel %vm811, 1, 0
      %v814 = vsel %vm812, 1, 0
      %v815 = vcvt.s32.f32 %v813
      %v816 = vcvt.s32.f32 %v814
      %v817 = vpack.c.bf16 %v816, %v815
      %v826 = vunpack.c.l.b16 %v788
      %v827 = vunpack.c.l.b16 %v789
      %v828 = vunpack.c.l.b16 %v790
      %v829 = vunpack.c.l.b16 %v791
      %v830 = vunpack.c.l.b16 %v792
      %v831 = vunpack.c.l.b16 %v793
      %v832 = vunpack.c.l.b16 %v794
      %v833 = vunpack.c.l.b16 %v795
      %v834 = vpack.c.b16 %v827, %v826
      %v835 = vpack.c.b16 %v829, %v828
      %v836 = vpack.c.b16 %v831, %v830
      %v837 = vpack.c.b16 %v833, %v832
      %vm842 = vcmask 523264
      %v844 = vsel %vm842, %v817, 0
      %846 = vmatprep.subr.bf16.mxu0 0
      %847 = vmatpush1.bf16.msra.mxu0 0
      %848 = vmatprep.subr.bf16.mxu0 0
      %849 = vmatpush1.bf16.msra.mxu0 0
      %850 = vmatprep.subr.bf16.mxu0 0
      %851 = vmatpush1.bf16.msra.mxu0 0
      %852 = vmatprep.subr.bf16.mxu0 0
      %853 = vmatpush1.bf16.msra.mxu0 0
      %854 = vmatprep.subr.bf16.mxu0 0
      %855 = vmatpush1.bf16.msra.mxu0 %v837
      %856 = vmatprep.subr.bf16.mxu0 0
      %857 = vmatpush1.bf16.msra.mxu0 %v836
      %858 = vmatprep.subr.bf16.mxu0 0
      %859 = vmatpush1.bf16.msra.mxu0 %v835
      %860 = vmatprep.subr.bf16.mxu0 0
      %861 = vmatpush1.bf16.msra.mxu0 %v834
      %862 = vmatprep.subr.bf16.mxu0 0
      %863 = vmatpush2.bf16.msra.mxu0 0
      %864 = vmatprep.subr.bf16.mxu0 0
      %865 = vmatpush2.bf16.msra.mxu0 0
      %866 = vmatprep.subr.bf16.mxu0 0
      %867 = vmatpush2.bf16.msra.mxu0 0
      %868 = vmatprep.subr.bf16.mxu0 0
      %869 = vmatpush2.bf16.msra.mxu0 0
      %870 = vmatprep.subr.bf16.mxu0 0
      %871 = vmatpush2.bf16.msra.mxu0 0
      %872 = vmatprep.subr.bf16.mxu0 0
      %873 = vmatpush2.bf16.msra.mxu0 0
      %874 = vmatprep.subr.bf16.mxu0 0
      %875 = vmatpush2.bf16.msra.mxu0 0
      %876 = vmatprep.subr.bf16.mxu0 0
      %877 = vmatpush2.bf16.msra.mxu0 0
      %878 = vmatprep.mubr.bf16.mxu0 0
      %879 = vmatmul.mubr.bf16.gmra.mxu0 %v844
      %v880 = vpop.f32.mrf.mxu0
      %v881 = vadd.f32 0.0, %v880
      %v882 = vpop.f32.mrf.mxu0
      %v883 = vpop.f32.mrf.mxu0
      %v884 = vadd.f32 0.0, %v883
      %v885 = vpop.f32.mrf.mxu0
      %886 = vdwg.mxu0
      %v887 = vmul.f32 %v881, %v786
      %v888 = vmul.f32 %v884, %v787
      %v889 = vpack.c.bf16 %v888, %v887
      %v894 = vunpack.c.l.b16 %v796
      %v895 = vunpack.c.l.b16 %v797
      %v896 = vunpack.c.l.b16 %v798
      %v897 = vunpack.c.l.b16 %v799
      %v898 = vpack.c.b16 %v895, %v894
      %v899 = vpack.c.b16 %v897, %v896
      %vm902 = vcmask 261120
      %v904 = vsel %vm902, %v889, 0
      %906 = vmatprep.subr.bf16.mxu0 0
      %907 = vmatpush1.bf16.msra.mxu0 0
      %908 = vmatprep.subr.bf16.mxu0 0
      %909 = vmatpush1.bf16.msra.mxu0 0
      %910 = vmatprep.subr.bf16.mxu0 0
      %911 = vmatpush1.bf16.msra.mxu0 0
      %912 = vmatprep.subr.bf16.mxu0 0
      %913 = vmatpush1.bf16.msra.mxu0 0
      %914 = vmatprep.subr.bf16.mxu0 0
      %915 = vmatpush1.bf16.msra.mxu0 0
      %916 = vmatprep.subr.bf16.mxu0 0
      %917 = vmatpush1.bf16.msra.mxu0 0
      %918 = vmatprep.subr.bf16.mxu0 0
      %919 = vmatpush1.bf16.msra.mxu0 %v899
      %920 = vmatprep.subr.bf16.mxu0 0
      %921 = vmatpush1.bf16.msra.mxu0 %v898
      %922 = vmatprep.subr.bf16.mxu0 0
      %923 = vmatpush2.bf16.msra.mxu0 0
      %924 = vmatprep.subr.bf16.mxu0 0
      %925 = vmatpush2.bf16.msra.mxu0 0
      %926 = vmatprep.subr.bf16.mxu0 0
      %927 = vmatpush2.bf16.msra.mxu0 0
      %928 = vmatprep.subr.bf16.mxu0 0
      %929 = vmatpush2.bf16.msra.mxu0 0
      %930 = vmatprep.subr.bf16.mxu0 0
      %931 = vmatpush2.bf16.msra.mxu0 0
      %932 = vmatprep.subr.bf16.mxu0 0
      %933 = vmatpush2.bf16.msra.mxu0 0
      %934 = vmatprep.subr.bf16.mxu0 0
      %935 = vmatpush2.bf16.msra.mxu0 0
      %936 = vmatprep.subr.bf16.mxu0 0
      %937 = vmatpush2.bf16.msra.mxu0 0
      %938 = vmatprep.mubr.bf16.mxu0 0
      %939 = vmatmul.mubr.bf16.gmra.mxu0 %v904
      %v940 = vpop.f32.mrf.mxu0
      %v941 = vadd.f32 0.0, %v940
      %v942 = vpop.f32.mrf.mxu0
      %v943 = vpop.f32.mrf.mxu0
      %v944 = vadd.f32 0.0, %v943
      %v945 = vpop.f32.mrf.mxu0
      %946 = vdwg.mxu0
      %v947 = vmul.f32 %v941, 0.5
      %v948 = vmul.f32 %v944, 0.5
      %949 = vset.pattern.permute.xlu0 1
      %950 = vperm.xlu0 %949, %v801
      %v951 = vpop.permute.xlu0 %950
      %952 = vset.pattern.permute.xlu0 1
      %953 = vperm.xlu0 %952, %v802
      %v954 = vpop.permute.xlu0 %953
      %vm955 = vcmp.eq.s32.totalorder %v804, %v951
      %vm956 = vcmp.eq.s32.totalorder %v804, %v954
      %v957 = vsel %vm955, 1, 0
      %v958 = vsel %vm956, 1, 0
      %v959 = vcvt.s32.f32 %v957
      %v960 = vcvt.s32.f32 %v958
      %v961 = vpack.c.bf16 %v960, %v959
      %v963 = vsel %vm842, %v961, 0
      %965 = vmatprep.subr.bf16.mxu0 0
      %966 = vmatpush1.bf16.msra.mxu0 0
      %967 = vmatprep.subr.bf16.mxu0 0
      %968 = vmatpush1.bf16.msra.mxu0 0
      %969 = vmatprep.subr.bf16.mxu0 0
      %970 = vmatpush1.bf16.msra.mxu0 0
      %971 = vmatprep.subr.bf16.mxu0 0
      %972 = vmatpush1.bf16.msra.mxu0 0
      %973 = vmatprep.subr.bf16.mxu0 0
      %974 = vmatpush1.bf16.msra.mxu0 %v837
      %975 = vmatprep.subr.bf16.mxu0 0
      %976 = vmatpush1.bf16.msra.mxu0 %v836
      %977 = vmatprep.subr.bf16.mxu0 0
      %978 = vmatpush1.bf16.msra.mxu0 %v835
      %979 = vmatprep.subr.bf16.mxu0 0
      %980 = vmatpush1.bf16.msra.mxu0 %v834
      %981 = vmatprep.subr.bf16.mxu0 0
      %982 = vmatpush2.bf16.msra.mxu0 0
      %983 = vmatprep.subr.bf16.mxu0 0
      %984 = vmatpush2.bf16.msra.mxu0 0
      %985 = vmatprep.subr.bf16.mxu0 0
      %986 = vmatpush2.bf16.msra.mxu0 0
      %987 = vmatprep.subr.bf16.mxu0 0
      %988 = vmatpush2.bf16.msra.mxu0 0
      %989 = vmatprep.subr.bf16.mxu0 0
      %990 = vmatpush2.bf16.msra.mxu0 0
      %991 = vmatprep.subr.bf16.mxu0 0
      %992 = vmatpush2.bf16.msra.mxu0 0
      %993 = vmatprep.subr.bf16.mxu0 0
      %994 = vmatpush2.bf16.msra.mxu0 0
      %995 = vmatprep.subr.bf16.mxu0 0
      %996 = vmatpush2.bf16.msra.mxu0 0
      %997 = vmatprep.mubr.bf16.mxu0 0
      %998 = vmatmul.mubr.bf16.gmra.mxu0 %v963
      %v999 = vpop.f32.mrf.mxu0
      %v1000 = vadd.f32 0.0, %v999
      %v1001 = vpop.f32.mrf.mxu0
      %v1002 = vpop.f32.mrf.mxu0
      %v1003 = vadd.f32 0.0, %v1002
      %v1004 = vpop.f32.mrf.mxu0
      %1005 = vdwg.mxu0
      %v1006 = vmul.f32 %v1000, %v786
      %v1007 = vmul.f32 %v1003, %v787
      %v1008 = vpack.c.bf16 %v1007, %v1006
      %v1010 = vsel %vm902, %v1008, 0
      %1012 = vmatprep.subr.bf16.mxu0 0
      %1013 = vmatpush1.bf16.msra.mxu0 0
      %1014 = vmatprep.subr.bf16.mxu0 0
      %1015 = vmatpush1.bf16.msra.mxu0 0
      %1016 = vmatprep.subr.bf16.mxu0 0
      %1017 = vmatpush1.bf16.msra.mxu0 0
      %1018 = vmatprep.subr.bf16.mxu0 0
      %1019 = vmatpush1.bf16.msra.mxu0 0
      %1020 = vmatprep.subr.bf16.mxu0 0
      %1021 = vmatpush1.bf16.msra.mxu0 0
      %1022 = vmatprep.subr.bf16.mxu0 0
      %1023 = vmatpush1.bf16.msra.mxu0 0
      %1024 = vmatprep.subr.bf16.mxu0 0
      %1025 = vmatpush1.bf16.msra.mxu0 %v899
      %1026 = vmatprep.subr.bf16.mxu0 0
      %1027 = vmatpush1.bf16.msra.mxu0 %v898
      %1028 = vmatprep.subr.bf16.mxu0 0
      %1029 = vmatpush2.bf16.msra.mxu0 0
      %1030 = vmatprep.subr.bf16.mxu0 0
      %1031 = vmatpush2.bf16.msra.mxu0 0
      %1032 = vmatprep.subr.bf16.mxu0 0
      %1033 = vmatpush2.bf16.msra.mxu0 0
      %1034 = vmatprep.subr.bf16.mxu0 0
      %1035 = vmatpush2.bf16.msra.mxu0 0
      %1036 = vmatprep.subr.bf16.mxu0 0
      %1037 = vmatpush2.bf16.msra.mxu0 0
      %1038 = vmatprep.subr.bf16.mxu0 0
      %1039 = vmatpush2.bf16.msra.mxu0 0
      %1040 = vmatprep.subr.bf16.mxu0 0
      %1041 = vmatpush2.bf16.msra.mxu0 0
      %1042 = vmatprep.subr.bf16.mxu0 0
      %1043 = vmatpush2.bf16.msra.mxu0 0
      %1044 = vmatprep.mubr.bf16.mxu0 0
      %1045 = vmatmul.mubr.bf16.gmra.mxu0 %v1010
      %v1046 = vpop.f32.mrf.mxu0
      %v1047 = vadd.f32 0.0, %v1046
      %v1048 = vpop.f32.mrf.mxu0
      %v1049 = vpop.f32.mrf.mxu0
      %v1050 = vadd.f32 0.0, %v1049
      %v1051 = vpop.f32.mrf.mxu0
      %1052 = vdwg.mxu0
      %v1053 = vmul.f32 %v1047, 0.5
      %v1054 = vmul.f32 %v1050, 0.5
      %1055 = vset.pattern.permute.xlu0 2
      %1056 = vperm.xlu0 %1055, %v801
      %v1057 = vpop.permute.xlu0 %1056
      %1058 = vset.pattern.permute.xlu0 2
      %1059 = vperm.xlu0 %1058, %v802
      %v1060 = vpop.permute.xlu0 %1059
      %vm1061 = vcmp.eq.s32.totalorder %v804, %v1057
      %vm1062 = vcmp.eq.s32.totalorder %v804, %v1060
      %v1063 = vsel %vm1061, 1, 0
      %v1064 = vsel %vm1062, 1, 0
      %v1065 = vcvt.s32.f32 %v1063
      %v1066 = vcvt.s32.f32 %v1064
      %v1067 = vpack.c.bf16 %v1066, %v1065
      %v1069 = vsel %vm842, %v1067, 0
      %1071 = vmatprep.subr.bf16.mxu0 0
      %1072 = vmatpush1.bf16.msra.mxu0 0
      %1073 = vmatprep.subr.bf16.mxu0 0
      %1074 = vmatpush1.bf16.msra.mxu0 0
      %1075 = vmatprep.subr.bf16.mxu0 0
      %1076 = vmatpush1.bf16.msra.mxu0 0
      %1077 = vmatprep.subr.bf16.mxu0 0
      %1078 = vmatpush1.bf16.msra.mxu0 0
      %1079 = vmatprep.subr.bf16.mxu0 0
      %1080 = vmatpush1.bf16.msra.mxu0 %v837
      %1081 = vmatprep.subr.bf16.mxu0 0
      %1082 = vmatpush1.bf16.msra.mxu0 %v836
      %1083 = vmatprep.subr.bf16.mxu0 0
      %1084 = vmatpush1.bf16.msra.mxu0 %v835
      %1085 = vmatprep.subr.bf16.mxu0 0
      %1086 = vmatpush1.bf16.msra.mxu0 %v834
      %1087 = vmatprep.subr.bf16.mxu0 0
      %1088 = vmatpush2.bf16.msra.mxu0 0
      %1089 = vmatprep.subr.bf16.mxu0 0
      %1090 = vmatpush2.bf16.msra.mxu0 0
      %1091 = vmatprep.subr.bf16.mxu0 0
      %1092 = vmatpush2.bf16.msra.mxu0 0
      %1093 = vmatprep.subr.bf16.mxu0 0
      %1094 = vmatpush2.bf16.msra.mxu0 0
      %1095 = vmatprep.subr.bf16.mxu0 0
      %1096 = vmatpush2.bf16.msra.mxu0 0
      %1097 = vmatprep.subr.bf16.mxu0 0
      %1098 = vmatpush2.bf16.msra.mxu0 0
      %1099 = vmatprep.subr.bf16.mxu0 0
      %1100 = vmatpush2.bf16.msra.mxu0 0
      %1101 = vmatprep.subr.bf16.mxu0 0
      %1102 = vmatpush2.bf16.msra.mxu0 0
      %1103 = vmatprep.mubr.bf16.mxu0 0
      %1104 = vmatmul.mubr.bf16.gmra.mxu0 %v1069
      %v1105 = vpop.f32.mrf.mxu0
      %v1106 = vadd.f32 0.0, %v1105
      %v1107 = vpop.f32.mrf.mxu0
      %v1108 = vpop.f32.mrf.mxu0
      %v1109 = vadd.f32 0.0, %v1108
      %v1110 = vpop.f32.mrf.mxu0
      %1111 = vdwg.mxu0
      %v1112 = vmul.f32 %v1106, %v786
      %v1113 = vmul.f32 %v1109, %v787
      %v1114 = vpack.c.bf16 %v1113, %v1112
      %v1116 = vsel %vm902, %v1114, 0
      %1118 = vmatprep.subr.bf16.mxu0 0
      %1119 = vmatpush1.bf16.msra.mxu0 0
      %1120 = vmatprep.subr.bf16.mxu0 0
      %1121 = vmatpush1.bf16.msra.mxu0 0
      %1122 = vmatprep.subr.bf16.mxu0 0
      %1123 = vmatpush1.bf16.msra.mxu0 0
      %1124 = vmatprep.subr.bf16.mxu0 0
      %1125 = vmatpush1.bf16.msra.mxu0 0
      %1126 = vmatprep.subr.bf16.mxu0 0
      %1127 = vmatpush1.bf16.msra.mxu0 0
      %1128 = vmatprep.subr.bf16.mxu0 0
      %1129 = vmatpush1.bf16.msra.mxu0 0
      %1130 = vmatprep.subr.bf16.mxu0 0
      %1131 = vmatpush1.bf16.msra.mxu0 %v899
      %1132 = vmatprep.subr.bf16.mxu0 0
      %1133 = vmatpush1.bf16.msra.mxu0 %v898
      %1134 = vmatprep.subr.bf16.mxu0 0
      %1135 = vmatpush2.bf16.msra.mxu0 0
      %1136 = vmatprep.subr.bf16.mxu0 0
      %1137 = vmatpush2.bf16.msra.mxu0 0
      %1138 = vmatprep.subr.bf16.mxu0 0
      %1139 = vmatpush2.bf16.msra.mxu0 0
      %1140 = vmatprep.subr.bf16.mxu0 0
      %1141 = vmatpush2.bf16.msra.mxu0 0
      %1142 = vmatprep.subr.bf16.mxu0 0
      %1143 = vmatpush2.bf16.msra.mxu0 0
      %1144 = vmatprep.subr.bf16.mxu0 0
      %1145 = vmatpush2.bf16.msra.mxu0 0
      %1146 = vmatprep.subr.bf16.mxu0 0
      %1147 = vmatpush2.bf16.msra.mxu0 0
      %1148 = vmatprep.subr.bf16.mxu0 0
      %1149 = vmatpush2.bf16.msra.mxu0 0
      %1150 = vmatprep.mubr.bf16.mxu0 0
      %1151 = vmatmul.mubr.bf16.gmra.mxu0 %v1116
      %v1152 = vpop.f32.mrf.mxu0
      %v1153 = vadd.f32 0.0, %v1152
      %v1154 = vpop.f32.mrf.mxu0
      %v1155 = vpop.f32.mrf.mxu0
      %v1156 = vadd.f32 0.0, %v1155
      %v1157 = vpop.f32.mrf.mxu0
      %1158 = vdwg.mxu0
      %v1159 = vmul.f32 %v1153, 0.5
      %v1160 = vmul.f32 %v1156, 0.5
      %1161 = vset.pattern.permute.xlu0 3
      %1162 = vperm.xlu0 %1161, %v801
      %v1163 = vpop.permute.xlu0 %1162
      %1164 = vset.pattern.permute.xlu0 3
      %1165 = vperm.xlu0 %1164, %v802
      %v1166 = vpop.permute.xlu0 %1165
      %vm1167 = vcmp.eq.s32.totalorder %v804, %v1163
      %vm1168 = vcmp.eq.s32.totalorder %v804, %v1166
      %v1169 = vsel %vm1167, 1, 0
      %v1170 = vsel %vm1168, 1, 0
      %v1171 = vcvt.s32.f32 %v1169
      %v1172 = vcvt.s32.f32 %v1170
      %v1173 = vpack.c.bf16 %v1172, %v1171
      %v1175 = vsel %vm842, %v1173, 0
      %1177 = vmatprep.subr.bf16.mxu0 0
      %1178 = vmatpush1.bf16.msra.mxu0 0
      %1179 = vmatprep.subr.bf16.mxu0 0
      %1180 = vmatpush1.bf16.msra.mxu0 0
      %1181 = vmatprep.subr.bf16.mxu0 0
      %1182 = vmatpush1.bf16.msra.mxu0 0
      %1183 = vmatprep.subr.bf16.mxu0 0
      %1184 = vmatpush1.bf16.msra.mxu0 0
      %1185 = vmatprep.subr.bf16.mxu0 0
      %1186 = vmatpush1.bf16.msra.mxu0 %v837
      %1187 = vmatprep.subr.bf16.mxu0 0
      %1188 = vmatpush1.bf16.msra.mxu0 %v836
      %1189 = vmatprep.subr.bf16.mxu0 0
      %1190 = vmatpush1.bf16.msra.mxu0 %v835
      %1191 = vmatprep.subr.bf16.mxu0 0
      %1192 = vmatpush1.bf16.msra.mxu0 %v834
      %1193 = vmatprep.subr.bf16.mxu0 0
      %1194 = vmatpush2.bf16.msra.mxu0 0
      %1195 = vmatprep.subr.bf16.mxu0 0
      %1196 = vmatpush2.bf16.msra.mxu0 0
      %1197 = vmatprep.subr.bf16.mxu0 0
      %1198 = vmatpush2.bf16.msra.mxu0 0
      %1199 = vmatprep.subr.bf16.mxu0 0
      %1200 = vmatpush2.bf16.msra.mxu0 0
      %1201 = vmatprep.subr.bf16.mxu0 0
      %1202 = vmatpush2.bf16.msra.mxu0 0
      %1203 = vmatprep.subr.bf16.mxu0 0
      %1204 = vmatpush2.bf16.msra.mxu0 0
      %1205 = vmatprep.subr.bf16.mxu0 0
      %1206 = vmatpush2.bf16.msra.mxu0 0
      %1207 = vmatprep.subr.bf16.mxu0 0
      %1208 = vmatpush2.bf16.msra.mxu0 0
      %1209 = vmatprep.mubr.bf16.mxu0 0
      %1210 = vmatmul.mubr.bf16.gmra.mxu0 %v1175
      %v1211 = vpop.f32.mrf.mxu0
      %v1212 = vadd.f32 0.0, %v1211
      %v1213 = vpop.f32.mrf.mxu0
      %v1214 = vpop.f32.mrf.mxu0
      %v1215 = vadd.f32 0.0, %v1214
      %v1216 = vpop.f32.mrf.mxu0
      %1217 = vdwg.mxu0
      %v1218 = vmul.f32 %v1212, %v786
      %v1219 = vmul.f32 %v1215, %v787
      %v1220 = vpack.c.bf16 %v1219, %v1218
      %v1222 = vsel %vm902, %v1220, 0
      %1224 = vmatprep.subr.bf16.mxu0 0
      %1225 = vmatpush1.bf16.msra.mxu0 0
      %1226 = vmatprep.subr.bf16.mxu0 0
      %1227 = vmatpush1.bf16.msra.mxu0 0
      %1228 = vmatprep.subr.bf16.mxu0 0
      %1229 = vmatpush1.bf16.msra.mxu0 0
      %1230 = vmatprep.subr.bf16.mxu0 0
      %1231 = vmatpush1.bf16.msra.mxu0 0
      %1232 = vmatprep.subr.bf16.mxu0 0
      %1233 = vmatpush1.bf16.msra.mxu0 0
      %1234 = vmatprep.subr.bf16.mxu0 0
      %1235 = vmatpush1.bf16.msra.mxu0 0
      %1236 = vmatprep.subr.bf16.mxu0 0
      %1237 = vmatpush1.bf16.msra.mxu0 %v899
      %1238 = vmatprep.subr.bf16.mxu0 0
      %1239 = vmatpush1.bf16.msra.mxu0 %v898
      %1240 = vmatprep.subr.bf16.mxu0 0
      %1241 = vmatpush2.bf16.msra.mxu0 0
      %1242 = vmatprep.subr.bf16.mxu0 0
      %1243 = vmatpush2.bf16.msra.mxu0 0
      %1244 = vmatprep.subr.bf16.mxu0 0
      %1245 = vmatpush2.bf16.msra.mxu0 0
      %1246 = vmatprep.subr.bf16.mxu0 0
      %1247 = vmatpush2.bf16.msra.mxu0 0
      %1248 = vmatprep.subr.bf16.mxu0 0
      %1249 = vmatpush2.bf16.msra.mxu0 0
      %1250 = vmatprep.subr.bf16.mxu0 0
      %1251 = vmatpush2.bf16.msra.mxu0 0
      %1252 = vmatprep.subr.bf16.mxu0 0
      %1253 = vmatpush2.bf16.msra.mxu0 0
      %1254 = vmatprep.subr.bf16.mxu0 0
      %1255 = vmatpush2.bf16.msra.mxu0 0
      %1256 = vmatprep.mubr.bf16.mxu0 0
      %1257 = vmatmul.mubr.bf16.gmra.mxu0 %v1222
      %v1258 = vpop.f32.mrf.mxu0
      %v1259 = vadd.f32 0.0, %v1258
      %v1260 = vpop.f32.mrf.mxu0
      %v1261 = vpop.f32.mrf.mxu0
      %v1262 = vadd.f32 0.0, %v1261
      %v1263 = vpop.f32.mrf.mxu0
      %1264 = vdwg.mxu0
      %v1265 = vmul.f32 %v1259, 0.5
      %v1266 = vmul.f32 %v1262, 0.5
      %v1267 = vmax.f32 %v947, %v1053
      %v1268 = vmax.f32 %v948, %v1054
      %v1269 = vmax.f32 %v1267, %v1159
      %v1270 = vmax.f32 %v1268, %v1160
      %v1271 = vmax.f32 %v1269, %v1265
      %v1272 = vmax.f32 %v1270, %v1266
      %v1273 = vsub.f32 %v947, %v1271
      %v1274 = vsub.f32 %v948, %v1272
      %v1275 = vmul.f32 %v1273, 1.442695
      %v1276 = vpow.pop %v1275
      %v1277 = vmul.f32 %v1274, 1.442695
      %v1278 = vpow.pop %v1277
      %v1279 = vsub.f32 %v1053, %v1271
      %v1280 = vsub.f32 %v1054, %v1272
      %v1281 = vmul.f32 %v1279, 1.442695
      %v1282 = vpow.pop %v1281
      %v1283 = vmul.f32 %v1280, 1.442695
      %v1284 = vpow.pop %v1283
      %v1285 = vsub.f32 %v1159, %v1271
      %v1286 = vsub.f32 %v1160, %v1272
      %v1287 = vmul.f32 %v1285, 1.442695
      %v1288 = vpow.pop %v1287
      %v1289 = vmul.f32 %v1286, 1.442695
      %v1290 = vpow.pop %v1289
      %v1291 = vsub.f32 %v1265, %v1271
      %v1292 = vsub.f32 %v1266, %v1272
      %v1293 = vmul.f32 %v1291, 1.442695
      %v1294 = vpow.pop %v1293
      %v1295 = vmul.f32 %v1292, 1.442695
      %v1296 = vpow.pop %v1295
      %v1297 = vadd.f32 %v1276, %v1282
      %v1298 = vadd.f32 %v1278, %v1284
      %v1299 = vadd.f32 %v1297, %v1288
      %v1300 = vadd.f32 %v1298, %v1290
      %v1301 = vadd.f32 %v1299, %v1294
      %v1302 = vadd.f32 %v1300, %v1296
      %v1303 = vrcp.pop %v1301
      %v1304 = vrcp.pop %v1302
      %v1305 = vmul.f32 %v1276, %v1303
      %v1306 = vmul.f32 %v1278, %v1304
      %v1307 = vpack.c.bf16 %v1306, %v1305
      %vm1308 = vcmask 64512
      %v1310 = vsel %vm1308, %v1307, 0
      %vm1312 = vcmask 1043456
      %v1314 = vsel %vm1312, %v800, 0
      %1316 = vmatprep.subr.bf16.mxu0 0
      %1317 = vmatpush1.bf16.msra.mxu0 0
      %1318 = vmatprep.subr.bf16.mxu0 0
      %1319 = vmatpush1.bf16.msra.mxu0 0
      %1320 = vmatprep.subr.bf16.mxu0 0
      %1321 = vmatpush1.bf16.msra.mxu0 0
      %1322 = vmatprep.subr.bf16.mxu0 0
      %1323 = vmatpush1.bf16.msra.mxu0 0
      %1324 = vmatprep.subr.bf16.mxu0 0
      %1325 = vmatpush1.bf16.msra.mxu0 0
      %1326 = vmatprep.subr.bf16.mxu0 0
      %1327 = vmatpush1.bf16.msra.mxu0 0
      %1328 = vmatprep.subr.bf16.mxu0 0
      %1329 = vmatpush1.bf16.msra.mxu0 0
      %1330 = vmatprep.subr.bf16.mxu0 0
      %1331 = vmatpush1.bf16.msra.mxu0 %v1314
      %1332 = vmatprep.subr.bf16.mxu0 0
      %1333 = vmatpush2.bf16.msra.mxu0 0
      %1334 = vmatprep.subr.bf16.mxu0 0
      %1335 = vmatpush2.bf16.msra.mxu0 0
      %1336 = vmatprep.subr.bf16.mxu0 0
      %1337 = vmatpush2.bf16.msra.mxu0 0
      %1338 = vmatprep.subr.bf16.mxu0 0
      %1339 = vmatpush2.bf16.msra.mxu0 0
      %1340 = vmatprep.subr.bf16.mxu0 0
      %1341 = vmatpush2.bf16.msra.mxu0 0
      %1342 = vmatprep.subr.bf16.mxu0 0
      %1343 = vmatpush2.bf16.msra.mxu0 0
      %1344 = vmatprep.subr.bf16.mxu0 0
      %1345 = vmatpush2.bf16.msra.mxu0 0
      %1346 = vmatprep.subr.bf16.mxu0 0
      %1347 = vmatpush2.bf16.msra.mxu0 0
      %1348 = vmatprep.mubr.bf16.mxu0 0
      %1349 = vmatmul.mubr.bf16.gmra.mxu0 %v1310
      %v1350 = vpop.f32.mrf.mxu0
      %v1351 = vadd.f32 0.0, %v1350
      %v1352 = vpop.f32.mrf.mxu0
      %v1353 = vpop.f32.mrf.mxu0
      %v1354 = vadd.f32 0.0, %v1353
      %v1355 = vpop.f32.mrf.mxu0
      %1356 = vdwg.mxu0
      %1359 = vrot.lane.b32.xlu0 %v881, 96
      %v1360 = vpop.permute.xlu0 %1359
      %1361 = vrot.lane.b32.xlu0 %v884, 96
      %v1362 = vpop.permute.xlu0 %1361
      %v1365 = vmul.f32 %v1351, %v1360
      %v1366 = vmul.f32 %v1354, %v1362
      %v1367 = vadd.f32 %v1365, 0.0
      %v1368 = vadd.f32 %v1366, 0.0
      %v1369 = vmul.f32 %v1282, %v1303
      %v1370 = vmul.f32 %v1284, %v1304
      %v1371 = vpack.c.bf16 %v1370, %v1369
      %v1373 = vsel %vm1308, %v1371, 0
      %1375 = vmatprep.subr.bf16.mxu0 0
      %1376 = vmatpush1.bf16.msra.mxu0 0
      %1377 = vmatprep.subr.bf16.mxu0 0
      %1378 = vmatpush1.bf16.msra.mxu0 0
      %1379 = vmatprep.subr.bf16.mxu0 0
      %1380 = vmatpush1.bf16.msra.mxu0 0
      %1381 = vmatprep.subr.bf16.mxu0 0
      %1382 = vmatpush1.bf16.msra.mxu0 0
      %1383 = vmatprep.subr.bf16.mxu0 0
      %1384 = vmatpush1.bf16.msra.mxu0 0
      %1385 = vmatprep.subr.bf16.mxu0 0
      %1386 = vmatpush1.bf16.msra.mxu0 0
      %1387 = vmatprep.subr.bf16.mxu0 0
      %1388 = vmatpush1.bf16.msra.mxu0 0
      %1389 = vmatprep.subr.bf16.mxu0 0
      %1390 = vmatpush1.bf16.msra.mxu0 %v1314
      %1391 = vmatprep.subr.bf16.mxu0 0
      %1392 = vmatpush2.bf16.msra.mxu0 0
      %1393 = vmatprep.subr.bf16.mxu0 0
      %1394 = vmatpush2.bf16.msra.mxu0 0
      %1395 = vmatprep.subr.bf16.mxu0 0
      %1396 = vmatpush2.bf16.msra.mxu0 0
      %1397 = vmatprep.subr.bf16.mxu0 0
      %1398 = vmatpush2.bf16.msra.mxu0 0
      %1399 = vmatprep.subr.bf16.mxu0 0
      %1400 = vmatpush2.bf16.msra.mxu0 0
      %1401 = vmatprep.subr.bf16.mxu0 0
      %1402 = vmatpush2.bf16.msra.mxu0 0
      %1403 = vmatprep.subr.bf16.mxu0 0
      %1404 = vmatpush2.bf16.msra.mxu0 0
      %1405 = vmatprep.subr.bf16.mxu0 0
      %1406 = vmatpush2.bf16.msra.mxu0 0
      %1407 = vmatprep.mubr.bf16.mxu0 0
      %1408 = vmatmul.mubr.bf16.gmra.mxu0 %v1373
      %v1409 = vpop.f32.mrf.mxu0
      %v1410 = vadd.f32 0.0, %v1409
      %v1411 = vpop.f32.mrf.mxu0
      %v1412 = vpop.f32.mrf.mxu0
      %v1413 = vadd.f32 0.0, %v1412
      %v1414 = vpop.f32.mrf.mxu0
      %1415 = vdwg.mxu0
      %1418 = vrot.lane.b32.xlu0 %v1000, 96
      %v1419 = vpop.permute.xlu0 %1418
      %1420 = vrot.lane.b32.xlu0 %v1003, 96
      %v1421 = vpop.permute.xlu0 %1420
      %v1424 = vmul.f32 %v1410, %v1419
      %v1425 = vmul.f32 %v1413, %v1421
      %v1426 = vadd.f32 %v1367, %v1424
      %v1427 = vadd.f32 %v1368, %v1425
      %v1428 = vmul.f32 %v1288, %v1303
      %v1429 = vmul.f32 %v1290, %v1304
      %v1430 = vpack.c.bf16 %v1429, %v1428
      %v1432 = vsel %vm1308, %v1430, 0
      %1434 = vmatprep.subr.bf16.mxu0 0
      %1435 = vmatpush1.bf16.msra.mxu0 0
      %1436 = vmatprep.subr.bf16.mxu0 0
      %1437 = vmatpush1.bf16.msra.mxu0 0
      %1438 = vmatprep.subr.bf16.mxu0 0
      %1439 = vmatpush1.bf16.msra.mxu0 0
      %1440 = vmatprep.subr.bf16.mxu0 0
      %1441 = vmatpush1.bf16.msra.mxu0 0
      %1442 = vmatprep.subr.bf16.mxu0 0
      %1443 = vmatpush1.bf16.msra.mxu0 0
      %1444 = vmatprep.subr.bf16.mxu0 0
      %1445 = vmatpush1.bf16.msra.mxu0 0
      %1446 = vmatprep.subr.bf16.mxu0 0
      %1447 = vmatpush1.bf16.msra.mxu0 0
      %1448 = vmatprep.subr.bf16.mxu0 0
      %1449 = vmatpush1.bf16.msra.mxu0 %v1314
      %1450 = vmatprep.subr.bf16.mxu0 0
      %1451 = vmatpush2.bf16.msra.mxu0 0
      %1452 = vmatprep.subr.bf16.mxu0 0
      %1453 = vmatpush2.bf16.msra.mxu0 0
      %1454 = vmatprep.subr.bf16.mxu0 0
      %1455 = vmatpush2.bf16.msra.mxu0 0
      %1456 = vmatprep.subr.bf16.mxu0 0
      %1457 = vmatpush2.bf16.msra.mxu0 0
      %1458 = vmatprep.subr.bf16.mxu0 0
      %1459 = vmatpush2.bf16.msra.mxu0 0
      %1460 = vmatprep.subr.bf16.mxu0 0
      %1461 = vmatpush2.bf16.msra.mxu0 0
      %1462 = vmatprep.subr.bf16.mxu0 0
      %1463 = vmatpush2.bf16.msra.mxu0 0
      %1464 = vmatprep.subr.bf16.mxu0 0
      %1465 = vmatpush2.bf16.msra.mxu0 0
      %1466 = vmatprep.mubr.bf16.mxu0 0
      %1467 = vmatmul.mubr.bf16.gmra.mxu0 %v1432
      %v1468 = vpop.f32.mrf.mxu0
      %v1469 = vadd.f32 0.0, %v1468
      %v1470 = vpop.f32.mrf.mxu0
      %v1471 = vpop.f32.mrf.mxu0
      %v1472 = vadd.f32 0.0, %v1471
      %v1473 = vpop.f32.mrf.mxu0
      %1474 = vdwg.mxu0
      %1477 = vrot.lane.b32.xlu0 %v1106, 96
      %v1478 = vpop.permute.xlu0 %1477
      %1479 = vrot.lane.b32.xlu0 %v1109, 96
      %v1480 = vpop.permute.xlu0 %1479
      %v1483 = vmul.f32 %v1469, %v1478
      %v1484 = vmul.f32 %v1472, %v1480
      %v1485 = vadd.f32 %v1426, %v1483
      %v1486 = vadd.f32 %v1427, %v1484
      %v1487 = vmul.f32 %v1294, %v1303
      %v1488 = vmul.f32 %v1296, %v1304
      %v1489 = vpack.c.bf16 %v1488, %v1487
      %v1491 = vsel %vm1308, %v1489, 0
      %1493 = vmatprep.subr.bf16.mxu0 0
      %1494 = vmatpush1.bf16.msra.mxu0 0
      %1495 = vmatprep.subr.bf16.mxu0 0
      %1496 = vmatpush1.bf16.msra.mxu0 0
      %1497 = vmatprep.subr.bf16.mxu0 0
      %1498 = vmatpush1.bf16.msra.mxu0 0
      %1499 = vmatprep.subr.bf16.mxu0 0
      %1500 = vmatpush1.bf16.msra.mxu0 0
      %1501 = vmatprep.subr.bf16.mxu0 0
      %1502 = vmatpush1.bf16.msra.mxu0 0
      %1503 = vmatprep.subr.bf16.mxu0 0
      %1504 = vmatpush1.bf16.msra.mxu0 0
      %1505 = vmatprep.subr.bf16.mxu0 0
      %1506 = vmatpush1.bf16.msra.mxu0 0
      %1507 = vmatprep.subr.bf16.mxu0 0
      %1508 = vmatpush1.bf16.msra.mxu0 %v1314
      %1509 = vmatprep.subr.bf16.mxu0 0
      %1510 = vmatpush2.bf16.msra.mxu0 0
      %1511 = vmatprep.subr.bf16.mxu0 0
      %1512 = vmatpush2.bf16.msra.mxu0 0
      %1513 = vmatprep.subr.bf16.mxu0 0
      %1514 = vmatpush2.bf16.msra.mxu0 0
      %1515 = vmatprep.subr.bf16.mxu0 0
      %1516 = vmatpush2.bf16.msra.mxu0 0
      %1517 = vmatprep.subr.bf16.mxu0 0
      %1518 = vmatpush2.bf16.msra.mxu0 0
      %1519 = vmatprep.subr.bf16.mxu0 0
      %1520 = vmatpush2.bf16.msra.mxu0 0
      %1521 = vmatprep.subr.bf16.mxu0 0
      %1522 = vmatpush2.bf16.msra.mxu0 0
      %1523 = vmatprep.subr.bf16.mxu0 0
      %1524 = vmatpush2.bf16.msra.mxu0 0
      %1525 = vmatprep.mubr.bf16.mxu0 0
      %1526 = vmatmul.mubr.bf16.gmra.mxu0 %v1491
      %v1527 = vpop.f32.mrf.mxu0
      %v1528 = vadd.f32 0.0, %v1527
      %v1529 = vpop.f32.mrf.mxu0
      %v1530 = vpop.f32.mrf.mxu0
      %v1531 = vadd.f32 0.0, %v1530
      %v1532 = vpop.f32.mrf.mxu0
      %1533 = vdwg.mxu0
      %1536 = vrot.lane.b32.xlu0 %v1212, 96
      %v1537 = vpop.permute.xlu0 %1536
      %1538 = vrot.lane.b32.xlu0 %v1215, 96
      %v1539 = vpop.permute.xlu0 %1538
      %v1542 = vmul.f32 %v1528, %v1537
      %v1543 = vmul.f32 %v1531, %v1539
      %v1544 = vadd.f32 %v1485, %v1542
      %v1545 = vadd.f32 %v1486, %v1543
      %v1546 = vpack.c.bf16 %v1545, %v1544
      %v1547 = vld [vmem:[%s3] sm:$0xf]
      %v1548 = vld [vmem:[%s3 + $0x4] sm:$0xf]
      %v1549 = vld [vmem:[%s3 + $0x8] sm:$0xf]
      %v1550 = vld [vmem:[%s3 + $0xc] sm:$0xf]
      %v1555 = vunpack.c.l.b16 %v1547
      %v1556 = vunpack.c.l.b16 %v1548
      %v1557 = vunpack.c.l.b16 %v1549
      %v1558 = vunpack.c.l.b16 %v1550
      %v1559 = vpack.c.b16 %v1556, %v1555
      %v1560 = vpack.c.b16 %v1558, %v1557
      %v1564 = vsel %vm902, %v1546, 0
      %1566 = vmatprep.subr.bf16.mxu0 0
      %1567 = vmatpush1.bf16.msra.mxu0 0
      %1568 = vmatprep.subr.bf16.mxu0 0
      %1569 = vmatpush1.bf16.msra.mxu0 0
      %1570 = vmatprep.subr.bf16.mxu0 0
      %1571 = vmatpush1.bf16.msra.mxu0 0
      %1572 = vmatprep.subr.bf16.mxu0 0
      %1573 = vmatpush1.bf16.msra.mxu0 0
      %1574 = vmatprep.subr.bf16.mxu0 0
      %1575 = vmatpush1.bf16.msra.mxu0 0
      %1576 = vmatprep.subr.bf16.mxu0 0
      %1577 = vmatpush1.bf16.msra.mxu0 0
      %1578 = vmatprep.subr.bf16.mxu0 0
      %1579 = vmatpush1.bf16.msra.mxu0 %v1560
      %1580 = vmatprep.subr.bf16.mxu0 0
      %1581 = vmatpush1.bf16.msra.mxu0 %v1559
      %1582 = vmatprep.subr.bf16.mxu0 0
      %1583 = vmatpush2.bf16.msra.mxu0 0
      %1584 = vmatprep.subr.bf16.mxu0 0
      %1585 = vmatpush2.bf16.msra.mxu0 0
      %1586 = vmatprep.subr.bf16.mxu0 0
      %1587 = vmatpush2.bf16.msra.mxu0 0
      %1588 = vmatprep.subr.bf16.mxu0 0
      %1589 = vmatpush2.bf16.msra.mxu0 0
      %1590 = vmatprep.subr.bf16.mxu0 0
      %1591 = vmatpush2.bf16.msra.mxu0 0
      %1592 = vmatprep.subr.bf16.mxu0 0
      %1593 = vmatpush2.bf16.msra.mxu0 0
      %1594 = vmatprep.subr.bf16.mxu0 0
      %1595 = vmatpush2.bf16.msra.mxu0 0
      %1596 = vmatprep.subr.bf16.mxu0 0
      %1597 = vmatpush2.bf16.msra.mxu0 0
      %1598 = vmatprep.mubr.bf16.mxu0 0
      %1599 = vmatmul.mubr.bf16.gmra.mxu0 %v1564
      %v1600 = vpop.f32.mrf.mxu0
      %v1601 = vadd.f32 0.0, %v1600
      %v1602 = vpop.f32.mrf.mxu0
      %v1603 = vpop.f32.mrf.mxu0
      %v1604 = vadd.f32 0.0, %v1603
      %v1605 = vpop.f32.mrf.mxu0
      %1606 = vdwg.mxu0
      %s1607 = scalar_lea.vmem %s452, %s784
      %v1608 = vld [vmem:[%s1607] sm:$0xff]
      %v1609 = vld [vmem:[%s1607 + $0x8] sm:$0xff]
      %v1610 = vadd.f32 %v1608, %v1601
      %v1611 = vadd.f32 %v1609, %v1604
      %v1612 = vpack.c.bf16 %v1611, %v1610
      %v1613 = vld [vmem:[%s4] sm:$0xf]
      %v1614 = vld [vmem:[%s4 + $0x4] sm:$0xf]
      %v1615 = vld [vmem:[%s4 + $0x8] sm:$0xf]
      %v1616 = vld [vmem:[%s4 + $0xc] sm:$0xf]
      %v1621 = vunpack.c.l.b16 %v1613
      %v1622 = vunpack.c.l.b16 %v1614
      %v1623 = vunpack.c.l.b16 %v1615
      %v1624 = vunpack.c.l.b16 %v1616
      %v1625 = vpack.c.b16 %v1622, %v1621
      %v1626 = vpack.c.b16 %v1624, %v1623
      %v1630 = vsel %vm902, %v1612, 0
      %1632 = vmatprep.subr.bf16.mxu0 0
      %1633 = vmatpush1.bf16.msra.mxu0 0
      %1634 = vmatprep.subr.bf16.mxu0 0
      %1635 = vmatpush1.bf16.msra.mxu0 0
      %1636 = vmatprep.subr.bf16.mxu0 0
      %1637 = vmatpush1.bf16.msra.mxu0 0
      %1638 = vmatprep.subr.bf16.mxu0 0
      %1639 = vmatpush1.bf16.msra.mxu0 0
      %1640 = vmatprep.subr.bf16.mxu0 0
      %1641 = vmatpush1.bf16.msra.mxu0 0
      %1642 = vmatprep.subr.bf16.mxu0 0
      %1643 = vmatpush1.bf16.msra.mxu0 0
      %1644 = vmatprep.subr.bf16.mxu0 0
      %1645 = vmatpush1.bf16.msra.mxu0 %v1626
      %1646 = vmatprep.subr.bf16.mxu0 0
      %1647 = vmatpush1.bf16.msra.mxu0 %v1625
      %1648 = vmatprep.subr.bf16.mxu0 0
      %1649 = vmatpush2.bf16.msra.mxu0 0
      %1650 = vmatprep.subr.bf16.mxu0 0
      %1651 = vmatpush2.bf16.msra.mxu0 0
      %1652 = vmatprep.subr.bf16.mxu0 0
      %1653 = vmatpush2.bf16.msra.mxu0 0
      %1654 = vmatprep.subr.bf16.mxu0 0
      %1655 = vmatpush2.bf16.msra.mxu0 0
      %1656 = vmatprep.subr.bf16.mxu0 0
      %1657 = vmatpush2.bf16.msra.mxu0 0
      %1658 = vmatprep.subr.bf16.mxu0 0
      %1659 = vmatpush2.bf16.msra.mxu0 0
      %1660 = vmatprep.subr.bf16.mxu0 0
      %1661 = vmatpush2.bf16.msra.mxu0 0
      %1662 = vmatprep.subr.bf16.mxu0 0
      %1663 = vmatpush2.bf16.msra.mxu0 0
      %1664 = vmatprep.mubr.bf16.mxu0 0
      %1665 = vmatmul.mubr.bf16.gmra.mxu0 %v1630
      %v1666 = vpop.f32.mrf.mxu0
      %v1667 = vadd.f32 0.0, %v1666
      %v1668 = vpop.f32.mrf.mxu0
      %v1669 = vpop.f32.mrf.mxu0
      %v1670 = vadd.f32 0.0, %v1669
      %v1671 = vpop.f32.mrf.mxu0
      %1672 = vdwg.mxu0
      %v1673 = vmax.f32 %v1667, 0.0
      %v1674 = vmax.f32 %v1670, 0.0
      %v1675 = vpack.c.bf16 %v1674, %v1673
      %v1676 = vld [vmem:[%s5] sm:$0xf]
      %v1677 = vld [vmem:[%s5 + $0x4] sm:$0xf]
      %v1678 = vld [vmem:[%s5 + $0x8] sm:$0xf]
      %v1679 = vld [vmem:[%s5 + $0xc] sm:$0xf]
      %v1684 = vunpack.c.l.b16 %v1676
      %v1685 = vunpack.c.l.b16 %v1677
      %v1686 = vunpack.c.l.b16 %v1678
      %v1687 = vunpack.c.l.b16 %v1679
      %v1688 = vpack.c.b16 %v1685, %v1684
      %v1689 = vpack.c.b16 %v1687, %v1686
      %v1693 = vsel %vm902, %v1675, 0
      %1695 = vmatprep.subr.bf16.mxu0 0
      %1696 = vmatpush1.bf16.msra.mxu0 0
      %1697 = vmatprep.subr.bf16.mxu0 0
      %1698 = vmatpush1.bf16.msra.mxu0 0
      %1699 = vmatprep.subr.bf16.mxu0 0
      %1700 = vmatpush1.bf16.msra.mxu0 0
      %1701 = vmatprep.subr.bf16.mxu0 0
      %1702 = vmatpush1.bf16.msra.mxu0 0
      %1703 = vmatprep.subr.bf16.mxu0 0
      %1704 = vmatpush1.bf16.msra.mxu0 0
      %1705 = vmatprep.subr.bf16.mxu0 0
      %1706 = vmatpush1.bf16.msra.mxu0 0
      %1707 = vmatprep.subr.bf16.mxu0 0
      %1708 = vmatpush1.bf16.msra.mxu0 %v1689
      %1709 = vmatprep.subr.bf16.mxu0 0
      %1710 = vmatpush1.bf16.msra.mxu0 %v1688
      %1711 = vmatprep.subr.bf16.mxu0 0
      %1712 = vmatpush2.bf16.msra.mxu0 0
      %1713 = vmatprep.subr.bf16.mxu0 0
      %1714 = vmatpush2.bf16.msra.mxu0 0
      %1715 = vmatprep.subr.bf16.mxu0 0
      %1716 = vmatpush2.bf16.msra.mxu0 0
      %1717 = vmatprep.subr.bf16.mxu0 0
      %1718 = vmatpush2.bf16.msra.mxu0 0
      %1719 = vmatprep.subr.bf16.mxu0 0
      %1720 = vmatpush2.bf16.msra.mxu0 0
      %1721 = vmatprep.subr.bf16.mxu0 0
      %1722 = vmatpush2.bf16.msra.mxu0 0
      %1723 = vmatprep.subr.bf16.mxu0 0
      %1724 = vmatpush2.bf16.msra.mxu0 0
      %1725 = vmatprep.subr.bf16.mxu0 0
      %1726 = vmatpush2.bf16.msra.mxu0 0
      %1727 = vmatprep.mubr.bf16.mxu0 0
      %1728 = vmatmul.mubr.bf16.gmra.mxu0 %v1693
      %v1729 = vpop.f32.mrf.mxu0
      %v1730 = vadd.f32 0.0, %v1729
      %v1731 = vpop.f32.mrf.mxu0
      %v1732 = vpop.f32.mrf.mxu0
      %v1733 = vadd.f32 0.0, %v1732
      %v1734 = vpop.f32.mrf.mxu0
      %1735 = vdwg.mxu0
      %v1736 = vld [vmem:[%s10] sm:$0x1]
      %v1737 = vld [vmem:[%s11] sm:$0x1]
      %v1738 = vsel %vm902, %v1730, 0.0
      %1739 = vadd.xlane.f32.xlu0 %v1738
      %v1740 = vpop.xlane.xlu0 %1739
      %v1741 = vsel %vm902, %v1733, 0.0
      %1742 = vadd.xlane.f32.xlu0 %v1741
      %v1743 = vpop.xlane.xlu0 %1742
      %v1744 = vrcp.pop 32.0
      %v1745 = vmul.f32 %v1740, %v1744
      %v1746 = vmul.f32 %v1743, %v1744
      %v1747 = vsub.f32 %v1730, %v1745
      %v1748 = vsub.f32 %v1733, %v1746
      %v1749 = vmul.f32 %v1747, %v1747
      %v1750 = vmul.f32 %v1748, %v1748
      %v1751 = vsel %vm902, %v1749, 0.0
      %1752 = vadd.xlane.f32.xlu0 %v1751
      %v1753 = vpop.xlane.xlu0 %1752
      %v1754 = vsel %vm902, %v1750, 0.0
      %1755 = vadd.xlane.f32.xlu0 %v1754
      %v1756 = vpop.xlane.xlu0 %1755
      %v1757 = vmul.f32 %v1753, %v1744
      %v1758 = vmul.f32 %v1756, %v1744
      %v1759 = vadd.f32 %v1757, 1e-05
      %v1760 = vadd.f32 %v1758, 1e-05
      %v1761 = vrsqrt.pop %v1759
      %v1762 = vrsqrt.pop %v1760
      %v1763 = vmul.f32 %v1747, %v1761
      %v1764 = vmul.f32 %v1748, %v1762
      %v1766 = vlaneseq
      %v1767 = vshrl.u32 %v1766, 7
      %v1768 = vsub.s32 0, %v1767
      %v1769 = vrot.slane %v1736, %v1768
      %v1771 = vmul.f32 %v1763, %v1769
      %v1772 = vmul.f32 %v1764, %v1769
      %v1774 = vlaneseq
      %v1775 = vshrl.u32 %v1774, 7
      %v1776 = vsub.s32 0, %v1775
      %v1777 = vrot.slane %v1737, %v1776
      %v1779 = vadd.f32 %v1771, %v1777
      %v1780 = vadd.f32 %v1772, %v1777
      %v1781 = vadd.f32 %v1608, %v1779
      %v1782 = vadd.f32 %v1609, %v1780
      %1783 = vst.msk [vmem:[%s471] sm:$0xff] %vm902, %v1781
      %1784 = vst.msk [vmem:[%s471 + $0x8] sm:$0xff] %vm902, %v1782
      %s1785 = smul.u32 2, %s28
      %p1786 = scmp.lt.s32.totalorder %s27, 1
      %s1787 = scalar_select %p1786, %s27, 1
      %p1788 = scmp.lt.s32.totalorder %s1785, 7
      %s1789 = scalar_select %p1788, %s1785, 7
      %s1790 = smul.addr %s1787, 8
      %s1791 = sadd.s32 %s1789, %s1790
      %s1792 = smul.addr %s1791, 8
      %s1793 = scalar_lea.vmem %s12, %s1792
      // Predicated region
      $region73: #{tpu_custom_call.1} parent=67 // pred_check
        %p1794 = pneg %p319
      $region74: #{tpu_custom_call.1} parent=67 // pred_check_branch
        %1796 = sbr.rel (%p1794) target = $region76
      $region75: #{tpu_custom_call.1} parent=67 // pred_region
        %s1797 = smul.u32 2, %s28
      $region76: #{tpu_custom_call.1} parent=67 // pred_fallthru
        _
    $region68: #{tpu_custom_call.1} parent=5 // pred_fallthru
      _
    %p1798 = scmp.le.s32.totalorder 2, %s18
    // Predicated region
    $region77: #{tpu_custom_call.1} parent=5 // pred_check
      %p1799 = pneg %p1798
    $region78: #{tpu_custom_call.1} parent=5 // pred_check_branch
      %1801 = sbr.rel (%p1799) target = $region80
    $region79: #{tpu_custom_call.1} parent=5 // pred_region
      %s1802 = ssub.s32 %s18, 2
      // Predicated region
      $region81: #{tpu_custom_call.1} parent=79 // pred_check
        %p1803 = pneg %p325
      $region82: #{tpu_custom_call.1} parent=79 // pred_check_branch
        %1805 = sbr.rel (%p1803) target = $region84
      $region83: #{tpu_custom_call.1} parent=79 // pred_region
        %s1806 = smul.u32 2, %s30
        %p1807 = scmp.lt.s32.totalorder %s29, 1
        %s1808 = scalar_select %p1807, %s29, 1
        %p1809 = scmp.lt.s32.totalorder %s1806, 7
        %s1810 = scalar_select %p1809, %s1806, 7
        %s1811 = smul.addr %s1808, 8
        %s1812 = sadd.s32 %s1810, %s1811
        %s1813 = smul.addr %s1812, 8
        %s1814 = scalar_lea.vmem %s12, %s1813
      $region84: #{tpu_custom_call.1} parent=79 // pred_fallthru
        _
    $region80: #{tpu_custom_call.1} parent=5 // pred_fallthru
      _
  $region6: #{tpu_custom_call.1} parent=0 // loop_footer
    %s22 = sadd.s32 1, %s18
  $region7: #{tpu_custom_call.1} parent=0 // loop_footer_branch
    %17 = sbr.rel target = $region3
  $region8: #{tpu_custom_call.1} parent=0 // loop_exit
    _

</llo_original>
